<compile_context>
chip_gen: v7x
topology: tpu7x:2x2x1
jax: 0.10.0
libtpu: 0.0.40
codegen_flags: <defaults>
</compile_context>

<pallas_src>
import jax
import jax.numpy as jnp
from jax import lax
from jax.experimental import pallas as pl
from jax.experimental.pallas import tpu as pltpu


def bottleneck_kernel(x_ref, w1_ref, w2_ref, w3_ref, b1_ref, b2_ref, b3_ref,
                      out_ref, acc_ref):
    """One grid step = NB images.

    x_ref   : (NB, H, W, Cin)  f32 activations, channels on lanes
    w1_ref  : (Cin, width)            bf16, bn1 scale folded in
    w2_ref  : (3*width, 3*width)      bf16, kx fused into K, ky packed into N,
                                      bn2 scale folded in
    w3_ref  : (width, Cout)           bf16, bn3 scale folded in
    b*_ref  : (1, C)                  f32 folded BN biases
    acc_ref : (NB, H, W, width)       f32 VMEM scratch accumulator for conv2
    """
    NB, H, W, Cin = x_ref.shape
    width = w1_ref.shape[1]
    Cout = w3_ref.shape[1]
    M = NB * H * W

    # ---- conv1 (1x1) + bn1 + relu : one (M, Cin) @ (Cin, width) bf16 matmul ----
    xb = x_ref[...].astype(jnp.bfloat16).reshape(M, Cin)
    h1 = jnp.dot(xb, w1_ref[...], preferred_element_type=jnp.float32)
    h1 = jnp.maximum(h1 + b1_ref[...], 0.0).reshape(NB, H, W, width)   # f32

    # ---- conv2 (3x3, pad=1) + bn2 + relu ----
    # kx taps fused into K: slab[.., x, :] = [h1[x-1] | h1[x] | h1[x+1]].
    zcol = jnp.zeros((NB, H, 1, width), jnp.float32)
    xm = jnp.concatenate([zcol, h1[:, :, :W - 1, :]], axis=2)          # h1[y, x-1]
    xp = jnp.concatenate([h1[:, :, 1:, :], zcol], axis=2)              # h1[y, x+1]
    slab = jnp.concatenate([xm, h1, xp], axis=-1)
    slab = slab.reshape(M, 3 * width).astype(jnp.bfloat16)

    # One fat matmul: output lane block j (= ky) gives
    #   p_j[y, x] = sum_kx h1[y, x+kx-1] @ W[ky=j, kx].
    # conv output row y = p1[y] + p0[y-1] + p2[y+1]  (+/-1 row = major-axis
    # shifts, accumulated in-place into the VMEM scratch).
    p = jnp.dot(slab, w2_ref[...], preferred_element_type=jnp.float32)
    p = p.reshape(NB, H, W, 3 * width)
    acc_ref[...] = p[:, :, :, width:2 * width]                         # ky = 1
    acc_ref[:, 1:, :, :] += p[:, :H - 1, :, :width]                    # ky = 0
    acc_ref[:, :H - 1, :, :] += p[:, 1:, :, 2 * width:]                # ky = 2

    h2 = jnp.maximum(acc_ref[...] + b2_ref[...], 0.0)                  # f32
    h2 = h2.reshape(M, width).astype(jnp.bfloat16)

    # ---- conv3 (1x1) + bn3 + residual + relu ----
    h3 = jnp.dot(h2, w3_ref[...], preferred_element_type=jnp.float32)
    resid = x_ref[...].reshape(M, Cout)            # late re-read (Cin == Cout)
    out = jnp.maximum(h3 + b3_ref[...] + resid, 0.0)
    out_ref[...] = out.reshape(NB, H, W, Cout).astype(out_ref.dtype)


def bottleneck_pallas(x_nhwc, w1, w2_packed, w3, b1, b2, b3, *,
                      images_per_step=2, vmem_limit_bytes=48 * 1024 * 1024):
    N, H, W, Cin = x_nhwc.shape
    width = w1.shape[1]
    Cout = w3.shape[1]
    # Fail loudly on configs this kernel does not cover (stride=1, no downsample).
    assert Cin == Cout, "downsample=None requires inplanes == planes * expansion"
    NB = min(images_per_step, N)
    assert N % NB == 0, "batch must be divisible by images_per_step"

    flops = int(2 * N * H * W * (Cin * width + 9 * width * width + width * Cout))
    bytes_accessed = int(4 * x_nhwc.size + 4 * N * H * W * Cout
                         + 2 * (w1.size + w2_packed.size + w3.size)
                         + 4 * (b1.size + b2.size + b3.size))

    full = lambda *shape: pl.BlockSpec(shape, lambda n: (0,) * len(shape))

    return pl.pallas_call(
        bottleneck_kernel,
        out_shape=jax.ShapeDtypeStruct((N, H, W, Cout), x_nhwc.dtype),
        grid_spec=pltpu.PrefetchScalarGridSpec(
            num_scalar_prefetch=0,
            grid=(N // NB,),
            in_specs=[
                pl.BlockSpec((NB, H, W, Cin), lambda n: (n, 0, 0, 0)),
                full(Cin, width),                  # w1 (bn1 scale folded, bf16)
                full(3 * width, 3 * width),        # w2 packed (kx in K, ky in N)
                full(width, Cout),                 # w3 (bn3 scale folded, bf16)
                full(1, width), full(1, width), full(1, Cout),   # biases (f32)
            ],
            out_specs=pl.BlockSpec((NB, H, W, Cout), lambda n: (n, 0, 0, 0)),
            scratch_shapes=[pltpu.VMEM((NB, H, W, width), jnp.float32)],
        ),
        compiler_params=pltpu.CompilerParams(
            dimension_semantics=("parallel",),
            vmem_limit_bytes=vmem_limit_bytes),
        cost_estimate=pl.CostEstimate(
            flops=flops, transcendentals=0, bytes_accessed=bytes_accessed),
    )(x_nhwc, w1, w2_packed, w3, b1, b2, b3)


def _fold_bn(gamma, beta, mean, var, eps=1e-5):
    scale = gamma / jnp.sqrt(var + eps)
    bias = beta - mean * scale
    return scale, bias


def fold_params(w1_oihw, w2_oihw, w3_oihw, bn1, bn2, bn3):
    """Fold eval-mode BN scales into HWIO conv weights (f32); return biases."""
    s1, b1 = _fold_bn(*bn1)
    s2, b2 = _fold_bn(*bn2)
    s3, b3 = _fold_bn(*bn3)
    w1_hwio = (jnp.transpose(w1_oihw[:, :, 0, 0], (1, 0)) * s1[None, :])[None, None]
    w2_hwio = jnp.transpose(w2_oihw, (2, 3, 1, 0)) * s2[None, None, None, :]
    w3_hwio = (jnp.transpose(w3_oihw[:, :, 0, 0], (1, 0)) * s3[None, :])[None, None]
    return (w1_hwio, w2_hwio, w3_hwio), (b1[None, :], b2[None, :], b3[None, :])


def prepare_kernel_params(w_hwio, biases):
    """Kernel matmul layouts: bf16 weights, kx fused into K, ky packed into N."""
    w1_hwio, w2_hwio, w3_hwio = w_hwio
    width = w1_hwio.shape[-1]
    w1 = w1_hwio[0, 0].astype(jnp.bfloat16)                  # (Cin, width)
    w3 = w3_hwio[0, 0].astype(jnp.bfloat16)                  # (width, Cout)
    # (ky,kx,I,O) -> per-ky (3*I, O) rows, then pack ky along the output axis.
    w2_rows = w2_hwio.reshape(3, 3 * width, width)
    w2_packed = jnp.concatenate([w2_rows[0], w2_rows[1], w2_rows[2]], axis=1)
    w2_packed = w2_packed.astype(jnp.bfloat16)               # (3*width, 3*width)
    b1, b2, b3 = biases
    return w1, w2_packed, w3, b1, b2, b3


def _ref_forward_f32(x_nchw, w1_oihw, w2_oihw, w3_oihw, bn_params, eps=1e-5):
    """Pure-f32 JAX reference of the PyTorch forward (NCHW, lax.conv)."""
    def bn(y, p):
        g, b, m, v = p
        s = (g / jnp.sqrt(v + eps))[None, :, None, None]
        return (y - m[None, :, None, None]) * s + b[None, :, None, None]
    dn = ("NCHW", "OIHW", "NCHW")
    hp = lax.Precision.HIGHEST
    out = lax.conv_general_dilated(x_nchw, w1_oihw, (1, 1), "VALID",
                                   dimension_numbers=dn, precision=hp)
    out = jax.nn.relu(bn(out, bn_params[0]))
    out = lax.conv_general_dilated(out, w2_oihw, (1, 1), ((1, 1), (1, 1)),
                                   dimension_numbers=dn, precision=hp)
    out = jax.nn.relu(bn(out, bn_params[1]))
    out = lax.conv_general_dilated(out, w3_oihw, (1, 1), "VALID",
                                   dimension_numbers=dn, precision=hp)
    out = bn(out, bn_params[2])
    return jax.nn.relu(out + x_nchw)


def _ref_forward_mixed(x_nhwc, w_hwio, biases):
    """Independent (lax.conv) reference with the SAME bf16 rounding points as
    the kernel: bf16 conv inputs/weights, f32 accumulation/bias/relu/residual."""
    w1, w2, w3 = w_hwio
    b1, b2, b3 = biases
    dn = ("NHWC", "HWIO", "NHWC")

    def conv(x, w, pad):
        return lax.conv_general_dilated(
            x.astype(jnp.bfloat16), w.astype(jnp.bfloat16), (1, 1), pad,
            dimension_numbers=dn, preferred_element_type=jnp.float32)

    h1 = jax.nn.relu(conv(x_nhwc, w1, "VALID") + b1)
    h2 = jax.nn.relu(conv(h1, w2, ((1, 1), (1, 1))) + b2)
    h3 = conv(h2, w3, "VALID") + b3
    return jax.nn.relu(h3 + x_nhwc)


if __name__ == "__main__":
    # Small config with lane-dense residual channels: inplanes = planes*expansion.
    planes = 32
    expansion = 4
    inplanes = planes * expansion          # 128 -> conv3 output / residual lane-dense
    width = planes                         # base_width=64, groups=1 -> width == planes
    N, H, W = 4, 8, 8

    key = jax.random.PRNGKey(0)
    ks = jax.random.split(key, 8)

    # Conv weights (PyTorch OIHW layout), float32.
    w1_oihw = jax.random.normal(ks[0], (width, inplanes, 1, 1), jnp.float32) * 0.1
    w2_oihw = jax.random.normal(ks[1], (width, width, 3, 3), jnp.float32) * 0.1
    w3_oihw = jax.random.normal(ks[2], (inplanes, width, 1, 1), jnp.float32) * 0.1

    def bn_init(k, c):
        k1, k2, k3, k4 = jax.random.split(k, 4)
        gamma = 1.0 + 0.1 * jax.random.normal(k1, (c,), jnp.float32)
        beta = 0.1 * jax.random.normal(k2, (c,), jnp.float32)
        mean = 0.1 * jax.random.normal(k3, (c,), jnp.float32)
        var = 1.0 + 0.1 * jax.random.uniform(k4, (c,), jnp.float32)
        return gamma, beta, mean, var

    bn1 = bn_init(ks[3], width)
    bn2 = bn_init(ks[4], width)
    bn3 = bn_init(ks[5], inplanes)

    # Input (NCHW as in the PyTorch module) and NHWC view for the kernel.
    x_nchw = jax.random.normal(ks[6], (N, inplanes, H, W), jnp.float32)
    x_nhwc = jnp.transpose(x_nchw, (0, 2, 3, 1))

    # Host-side param prep: BN folding (f32), then bf16 matmul layouts.
    w_hwio, biases = fold_params(w1_oihw, w2_oihw, w3_oihw, bn1, bn2, bn3)
    w1k, w2k, w3k, b1, b2, b3 = prepare_kernel_params(w_hwio, biases)

    out_nhwc = bottleneck_pallas(x_nhwc, w1k, w2k, w3k, b1, b2, b3,
                                 images_per_step=2)
    out_nchw = jnp.transpose(out_nhwc, (0, 3, 1, 2))
    jax.block_until_ready(out_nchw)

    # Tight check vs an independent lax.conv reference with matching bf16
    # rounding points (validates the slab / ky-packing / Pallas mechanics).
    ref_mixed = _ref_forward_mixed(x_nhwc, w_hwio, biases)
    err_mixed = float(jnp.max(jnp.abs(out_nhwc - ref_mixed)))
    assert err_mixed < 2e-3, f"mixed-precision mismatch: {err_mixed}"

    # Loose check vs the pure-f32 PyTorch-semantics reference (difference is
    # only the bf16 MXU inputs recommended by the perf review).
    ref_f32 = _ref_forward_f32(x_nchw, w1_oihw, w2_oihw, w3_oihw, (bn1, bn2, bn3))
    err_f32 = float(jnp.max(jnp.abs(out_nchw - ref_f32)))
    assert err_f32 < 0.5, f"f32 reference mismatch too large: {err_f32}"

    print("KERNEL_OK")
</pallas_src>

<mosaic_0001>
module attributes {stable_mosaic.version = 11 : i64} {
  func.func @bottleneck_kernel(%arg0: i32, %arg1: memref<2x8x8x128xf32, #tpu.memory_space<vmem>>, %arg2: memref<128x32xbf16, #tpu.memory_space<vmem>>, %arg3: memref<96x96xbf16, #tpu.memory_space<vmem>>, %arg4: memref<32x128xbf16, #tpu.memory_space<vmem>>, %arg5: memref<1x32xf32, #tpu.memory_space<vmem>>, %arg6: memref<1x32xf32, #tpu.memory_space<vmem>>, %arg7: memref<1x128xf32, #tpu.memory_space<vmem>>, %arg8: memref<2x8x8x128xf32, #tpu.memory_space<vmem>>, %arg9: memref<2x8x8x32xf32, #tpu.memory_space<vmem>>) attributes {dimension_semantics = [#tpu.dimension_semantics<parallel>], iteration_bounds = array<i64: 2>, scalar_prefetch = 0 : i64, scratch_operands = 1 : i64, tpu.core_type = #tpu.core_type<tc>, window_params = [{transform_indices = @transform_0, window_bounds = array<i64: 2, 8, 8, 128>}, {pipeline_mode = #tpu.pipeline_mode<synchronous>, transform_indices = @transform_1, window_bounds = array<i64: 128, 32>}, {pipeline_mode = #tpu.pipeline_mode<synchronous>, transform_indices = @transform_2, window_bounds = array<i64: 96, 96>}, {pipeline_mode = #tpu.pipeline_mode<synchronous>, transform_indices = @transform_3, window_bounds = array<i64: 32, 128>}, {pipeline_mode = #tpu.pipeline_mode<synchronous>, transform_indices = @transform_4, window_bounds = array<i64: 1, 32>}, {pipeline_mode = #tpu.pipeline_mode<synchronous>, transform_indices = @transform_5, window_bounds = array<i64: 1, 32>}, {pipeline_mode = #tpu.pipeline_mode<synchronous>, transform_indices = @transform_6, window_bounds = array<i64: 1, 128>}, {transform_indices = @transform_7, window_bounds = array<i64: 2, 8, 8, 128>}]} {
    %c0 = arith.constant 0 : index
    %c0_0 = arith.constant 0 : index
    %c0_1 = arith.constant 0 : index
    %c0_2 = arith.constant 0 : index
    %0 = vector.load %arg1[%c0, %c0_0, %c0_1, %c0_2] : memref<2x8x8x128xf32, #tpu.memory_space<vmem>>, vector<2x8x8x128xf32>
    %1 = arith.truncf %0 : vector<2x8x8x128xf32> to vector<2x8x8x128xbf16>
    %2 = vector.shape_cast %1 : vector<2x8x8x128xbf16> to vector<128x128xbf16>
    %c0_3 = arith.constant 0 : index
    %c0_4 = arith.constant 0 : index
    %3 = vector.load %arg2[%c0_3, %c0_4] : memref<128x32xbf16, #tpu.memory_space<vmem>>, vector<128x32xbf16>
    %cst = arith.constant dense<0.000000e+00> : vector<128x32xf32>
    %4 = tpu.matmul %2, %3, %cst {dimension_numbers = #tpu.dot_dimension_numbers<[1], [0], [0], [1], [0, 0, 1, 1], [], []>} : vector<128x128xbf16>, vector<128x32xbf16>, vector<128x32xf32> -> vector<128x32xf32>
    %c0_5 = arith.constant 0 : index
    %c0_6 = arith.constant 0 : index
    %5 = vector.load %arg5[%c0_5, %c0_6] : memref<1x32xf32, #tpu.memory_space<vmem>>, vector<1x32xf32>
    %6 = vector.broadcast %5 : vector<1x32xf32> to vector<128x32xf32>
    %7 = arith.addf %4, %6 : vector<128x32xf32>
    %cst_7 = arith.constant 0.000000e+00 : f32
    %8 = vector.broadcast %cst_7 : f32 to vector<128x32xf32>
    %9 = arith.maximumf %7, %8 : vector<128x32xf32>
    %10 = vector.shape_cast %9 : vector<128x32xf32> to vector<2x8x8x32xf32>
    %cst_8 = arith.constant 0.000000e+00 : f32
    %11 = vector.broadcast %cst_8 : f32 to vector<2x8x1x32xf32>
    %12 = vector.extract_strided_slice %10 {offsets = [0, 0, 0, 0], sizes = [2, 8, 7, 32], strides = [1, 1, 1, 1]} : vector<2x8x8x32xf32> to vector<2x8x7x32xf32>
    %13 = tpu.concatenate %11, %12 in 2 : vector<2x8x1x32xf32>, vector<2x8x7x32xf32> -> vector<2x8x8x32xf32>
    %14 = vector.extract_strided_slice %10 {offsets = [0, 0, 1, 0], sizes = [2, 8, 7, 32], strides = [1, 1, 1, 1]} : vector<2x8x8x32xf32> to vector<2x8x7x32xf32>
    %15 = tpu.concatenate %14, %11 in 2 : vector<2x8x7x32xf32>, vector<2x8x1x32xf32> -> vector<2x8x8x32xf32>
    %16 = tpu.concatenate %13, %10, %15 in 3 : vector<2x8x8x32xf32>, vector<2x8x8x32xf32>, vector<2x8x8x32xf32> -> vector<2x8x8x96xf32>
    %17 = vector.shape_cast %16 : vector<2x8x8x96xf32> to vector<128x96xf32>
    %18 = arith.truncf %17 : vector<128x96xf32> to vector<128x96xbf16>
    %c0_9 = arith.constant 0 : index
    %c0_10 = arith.constant 0 : index
    %19 = vector.load %arg3[%c0_9, %c0_10] : memref<96x96xbf16, #tpu.memory_space<vmem>>, vector<96x96xbf16>
    %cst_11 = arith.constant dense<0.000000e+00> : vector<128x96xf32>
    %20 = tpu.matmul %18, %19, %cst_11 {dimension_numbers = #tpu.dot_dimension_numbers<[1], [0], [0], [1], [0, 0, 1, 1], [], []>} : vector<128x96xbf16>, vector<96x96xbf16>, vector<128x96xf32> -> vector<128x96xf32>
    %21 = vector.shape_cast %20 : vector<128x96xf32> to vector<2x8x8x96xf32>
    %22 = vector.extract_strided_slice %21 {offsets = [0, 0, 0, 32], sizes = [2, 8, 8, 32], strides = [1, 1, 1, 1]} : vector<2x8x8x96xf32> to vector<2x8x8x32xf32>
    %c0_12 = arith.constant 0 : index
    %c0_13 = arith.constant 0 : index
    %c0_14 = arith.constant 0 : index
    %c0_15 = arith.constant 0 : index
    %23 = vector.load %arg9[%c0_12, %c0_13, %c0_14, %c0_15] : memref<2x8x8x32xf32, #tpu.memory_space<vmem>>, vector<2x8x8x32xf32>
    tpu.vector_store %arg9[%c0_12, %c0_13, %c0_14, %c0_15], %22 {strides = array<i32>} : memref<2x8x8x32xf32, #tpu.memory_space<vmem>>, vector<2x8x8x32xf32>,
    %c0_16 = arith.constant 0 : index
    %c1 = arith.constant 1 : index
    %c0_17 = arith.constant 0 : index
    %c0_18 = arith.constant 0 : index
    %24 = vector.load %arg9[%c0_16, %c1, %c0_17, %c0_18] : memref<2x8x8x32xf32, #tpu.memory_space<vmem>>, vector<2x7x8x32xf32>
    %25 = vector.extract_strided_slice %21 {offsets = [0, 0, 0, 0], sizes = [2, 7, 8, 32], strides = [1, 1, 1, 1]} : vector<2x8x8x96xf32> to vector<2x7x8x32xf32>
    %26 = arith.addf %24, %25 : vector<2x7x8x32xf32>
    %c0_19 = arith.constant 0 : index
    %c1_20 = arith.constant 1 : index
    %c0_21 = arith.constant 0 : index
    %c0_22 = arith.constant 0 : index
    %27 = vector.load %arg9[%c0_19, %c1_20, %c0_21, %c0_22] : memref<2x8x8x32xf32, #tpu.memory_space<vmem>>, vector<2x7x8x32xf32>
    tpu.vector_store %arg9[%c0_19, %c1_20, %c0_21, %c0_22], %26 {strides = array<i32>} : memref<2x8x8x32xf32, #tpu.memory_space<vmem>>, vector<2x7x8x32xf32>,
    %c0_23 = arith.constant 0 : index
    %c0_24 = arith.constant 0 : index
    %c0_25 = arith.constant 0 : index
    %c0_26 = arith.constant 0 : index
    %28 = vector.load %arg9[%c0_23, %c0_24, %c0_25, %c0_26] : memref<2x8x8x32xf32, #tpu.memory_space<vmem>>, vector<2x7x8x32xf32>
    %29 = vector.extract_strided_slice %21 {offsets = [0, 1, 0, 64], sizes = [2, 7, 8, 32], strides = [1, 1, 1, 1]} : vector<2x8x8x96xf32> to vector<2x7x8x32xf32>
    %30 = arith.addf %28, %29 : vector<2x7x8x32xf32>
    %c0_27 = arith.constant 0 : index
    %c0_28 = arith.constant 0 : index
    %c0_29 = arith.constant 0 : index
    %c0_30 = arith.constant 0 : index
    %31 = vector.load %arg9[%c0_27, %c0_28, %c0_29, %c0_30] : memref<2x8x8x32xf32, #tpu.memory_space<vmem>>, vector<2x7x8x32xf32>
    tpu.vector_store %arg9[%c0_27, %c0_28, %c0_29, %c0_30], %30 {strides = array<i32>} : memref<2x8x8x32xf32, #tpu.memory_space<vmem>>, vector<2x7x8x32xf32>,
    %c0_31 = arith.constant 0 : index
    %c0_32 = arith.constant 0 : index
    %c0_33 = arith.constant 0 : index
    %c0_34 = arith.constant 0 : index
    %32 = vector.load %arg9[%c0_31, %c0_32, %c0_33, %c0_34] : memref<2x8x8x32xf32, #tpu.memory_space<vmem>>, vector<2x8x8x32xf32>
    %c0_35 = arith.constant 0 : index
    %c0_36 = arith.constant 0 : index
    %33 = vector.load %arg6[%c0_35, %c0_36] : memref<1x32xf32, #tpu.memory_space<vmem>>, vector<1x32xf32>
    %34 = vector.shape_cast %33 : vector<1x32xf32> to vector<1x1x1x32xf32>
    %35 = vector.broadcast %34 : vector<1x1x1x32xf32> to vector<2x8x8x32xf32>
    %36 = arith.addf %32, %35 : vector<2x8x8x32xf32>
    %cst_37 = arith.constant 0.000000e+00 : f32
    %37 = vector.broadcast %cst_37 : f32 to vector<2x8x8x32xf32>
    %38 = arith.maximumf %36, %37 : vector<2x8x8x32xf32>
    %39 = vector.shape_cast %38 : vector<2x8x8x32xf32> to vector<128x32xf32>
    %40 = arith.truncf %39 : vector<128x32xf32> to vector<128x32xbf16>
    %c0_38 = arith.constant 0 : index
    %c0_39 = arith.constant 0 : index
    %41 = vector.load %arg4[%c0_38, %c0_39] : memref<32x128xbf16, #tpu.memory_space<vmem>>, vector<32x128xbf16>
    %cst_40 = arith.constant dense<0.000000e+00> : vector<128x128xf32>
    %42 = tpu.matmul %40, %41, %cst_40 {dimension_numbers = #tpu.dot_dimension_numbers<[1], [0], [0], [1], [0, 0, 1, 1], [], []>} : vector<128x32xbf16>, vector<32x128xbf16>, vector<128x128xf32> -> vector<128x128xf32>
    %c0_41 = arith.constant 0 : index
    %c0_42 = arith.constant 0 : index
    %c0_43 = arith.constant 0 : index
    %c0_44 = arith.constant 0 : index
    %43 = vector.load %arg1[%c0_41, %c0_42, %c0_43, %c0_44] : memref<2x8x8x128xf32, #tpu.memory_space<vmem>>, vector<2x8x8x128xf32>
    %44 = vector.shape_cast %43 : vector<2x8x8x128xf32> to vector<128x128xf32>
    %c0_45 = arith.constant 0 : index
    %c0_46 = arith.constant 0 : index
    %45 = vector.load %arg7[%c0_45, %c0_46] : memref<1x128xf32, #tpu.memory_space<vmem>>, vector<1x128xf32>
    %46 = vector.broadcast %45 : vector<1x128xf32> to vector<128x128xf32>
    %47 = arith.addf %42, %46 : vector<128x128xf32>
    %48 = arith.addf %47, %44 : vector<128x128xf32>
    %cst_47 = arith.constant 0.000000e+00 : f32
    %49 = vector.broadcast %cst_47 : f32 to vector<128x128xf32>
    %50 = arith.maximumf %48, %49 : vector<128x128xf32>
    %51 = vector.shape_cast %50 : vector<128x128xf32> to vector<2x8x8x128xf32>
    %c0_48 = arith.constant 0 : index
    %c0_49 = arith.constant 0 : index
    %c0_50 = arith.constant 0 : index
    %c0_51 = arith.constant 0 : index
    %52 = vector.load %arg8[%c0_48, %c0_49, %c0_50, %c0_51] : memref<2x8x8x128xf32, #tpu.memory_space<vmem>>, vector<2x8x8x128xf32>
    tpu.vector_store %arg8[%c0_48, %c0_49, %c0_50, %c0_51], %51 {strides = array<i32>} : memref<2x8x8x128xf32, #tpu.memory_space<vmem>>, vector<2x8x8x128xf32>,
    return
  }
  func.func @transform_0(%arg0: i32) -> (i32, i32, i32, i32) {
    %c0_i32 = arith.constant 0 : i32
    %c0_i32_0 = arith.constant 0 : i32
    %c0_i32_1 = arith.constant 0 : i32
    %c0_i32_2 = arith.constant 0 : i32
    return %arg0, %c0_i32, %c0_i32_0, %c0_i32_1 : i32, i32, i32, i32
  }
  func.func @transform_1(%arg0: i32) -> (i32, i32) {
    %c0_i32 = arith.constant 0 : i32
    %c0_i32_0 = arith.constant 0 : i32
    %c0_i32_1 = arith.constant 0 : i32
    return %c0_i32, %c0_i32_0 : i32, i32
  }
  func.func @transform_2(%arg0: i32) -> (i32, i32) {
    %c0_i32 = arith.constant 0 : i32
    %c0_i32_0 = arith.constant 0 : i32
    %c0_i32_1 = arith.constant 0 : i32
    return %c0_i32, %c0_i32_0 : i32, i32
  }
  func.func @transform_3(%arg0: i32) -> (i32, i32) {
    %c0_i32 = arith.constant 0 : i32
    %c0_i32_0 = arith.constant 0 : i32
    %c0_i32_1 = arith.constant 0 : i32
    return %c0_i32, %c0_i32_0 : i32, i32
  }
  func.func @transform_4(%arg0: i32) -> (i32, i32) {
    %c0_i32 = arith.constant 0 : i32
    %c0_i32_0 = arith.constant 0 : i32
    %c0_i32_1 = arith.constant 0 : i32
    return %c0_i32, %c0_i32_0 : i32, i32
  }
  func.func @transform_5(%arg0: i32) -> (i32, i32) {
    %c0_i32 = arith.constant 0 : i32
    %c0_i32_0 = arith.constant 0 : i32
    %c0_i32_1 = arith.constant 0 : i32
    return %c0_i32, %c0_i32_0 : i32, i32
  }
  func.func @transform_6(%arg0: i32) -> (i32, i32) {
    %c0_i32 = arith.constant 0 : i32
    %c0_i32_0 = arith.constant 0 : i32
    %c0_i32_1 = arith.constant 0 : i32
    return %c0_i32, %c0_i32_0 : i32, i32
  }
  func.func @transform_7(%arg0: i32) -> (i32, i32, i32, i32) {
    %c0_i32 = arith.constant 0 : i32
    %c0_i32_0 = arith.constant 0 : i32
    %c0_i32_1 = arith.constant 0 : i32
    %c0_i32_2 = arith.constant 0 : i32
    return %arg0, %c0_i32, %c0_i32_0, %c0_i32_1 : i32, i32, i32, i32
  }
}

</mosaic_0001>

<llo_original>
// kernel: tpu_custom_call.1
$region0: #{tpu_custom_call.1}
  #allocation0 [shape = 'u32[]', space=smem, size = 0x4, offset = 0x4, fixed_abs, tag = 'smem constant byte address 0x4 - core index']
  #allocation1 [shape = 'u32[144,128]{1,0:T(1,128)}', space=vmem, size = 0x12000, scoped, tag = 'internal scratch']
  #allocation2 [shape = 'f32[2,8,8,32]{3,2,1,0:T(8,128)}', space=vmem, size = 0x10000, scoped, tag = 'scratch operand']
  %s0 = inlined_call_operand.hbm [shape: f32[4,8,8,128], index: 0, kind: input, shape index: {}]
  %s1 = inlined_call_operand.vmem [shape: bf16[128,32], index: 1, kind: input, shape index: {}]
  %s2 = inlined_call_operand.vmem [shape: bf16[96,96], index: 2, kind: input, shape index: {}]
  %s3 = inlined_call_operand.vmem [shape: bf16[32,128], index: 3, kind: input, shape index: {}]
  %s4 = inlined_call_operand.vmem [shape: f32[1,32], index: 4, kind: input, shape index: {}]
  %s5 = inlined_call_operand.vmem [shape: f32[1,32], index: 5, kind: input, shape index: {}]
  %s6 = inlined_call_operand.vmem [shape: f32[1,128], index: 6, kind: input, shape index: {}]
  %s7 = inlined_call_operand.hbm [shape: f32[4,8,8,128], index: 7, kind: output, shape index: {}]
  %s8 = sld [smem:[#allocation0]]
  $region65: #{tpu_custom_call.1} parent=0
    _
  %s10 = ssub.s32 1, %s8
  %s11 = scalar_select 0, %s10, %s8
  $region1: #{tpu_custom_call.1} parent=0
    #allocation3 [shape = 'u8[131072]{0}', space=vmem, size = 0x20000, scoped, tag = 'input window, operand 0']
    #allocation4 [shape = 's32[2]{0}', space=sflag, size = 0x8, scoped, tag = 'scoped memory for tpu_custom_call.1']
    #allocation5 [shape = 's32[2]{0}', space=sflag, size = 0x8, scoped, tag = 'scoped memory for tpu_custom_call.1']
    #allocation6 [shape = 'u8[131072]{0}', space=vmem, size = 0x20000, scoped, tag = 'output window, operand 0']
    %12 = vsyncpa [#allocation4], 0
    %s13 = scalar_lea.sflag [#allocation4], 1
    %14 = vsyncpa %s13, 0
    %15 = vsyncpa [#allocation5], 0
    %s16 = scalar_lea.sflag [#allocation5], 1
    %17 = vsyncpa %s16, 0
    loop: start=0, step=1, limit=4
    $region2: #{tpu_custom_call.1} parent=1 // loop_pre_header
      _
    $region3: #{tpu_custom_call.1} parent=1 // loop_header
      %s19 = sphi 0, %s23
      %p20 = scmp.ge.s32.totalorder %s19, 4
      %s29 = sphi 0, %s31
      %s32 = sphi 0, %s29
      %s33 = sphi 0, %s32
      %s49 = sphi 0, %s33
      %s53 = sphi 0, %s53
      %s55 = sphi 0, %s53
      %s56 = sphi 0, %s55
      %s70 = sphi 0, %s56
      %s74 = sphi 0, %s74
      %s76 = sphi 0, %s74
      %s77 = sphi 0, %s76
      %s91 = sphi 0, %s77
      %s95 = sphi 0, %s95
      %s97 = sphi 0, %s95
      %s98 = sphi 0, %s97
      %s112 = sphi 0, %s98
      %s116 = sphi 0, %s116
      %s118 = sphi 0, %s116
      %s119 = sphi 0, %s118
      %s133 = sphi 0, %s119
      %s137 = sphi 0, %s137
      %s139 = sphi 0, %s137
      %s140 = sphi 0, %s139
      %s154 = sphi 0, %s140
      %s158 = sphi 0, %s158
      %s160 = sphi 0, %s158
      %s161 = sphi 0, %s160
      %s175 = sphi 0, %s161
      %s181 = sphi 0, %s183
      %s184 = sphi 0, %s181
      %s185 = sphi 0, %s184
      %s201 = sphi 0, %s185
    $region4: #{tpu_custom_call.1} parent=1 // loop_header_branch
      %22 = sbr.rel (%p20) target = $region8
    $region5: #{tpu_custom_call.1} parent=1 // loop_body
      %s24 = ssub.s32 %s19, 1
      %s25 = ssub.s32 %s19, 2
      %s26 = sadd.s32 %s19, 1
      %s27 = ssub.s32 %s19, %s26
      %p28 = scmp.eq.s32.totalorder %s27, 0
      %s30 = sadd.s32 %s29, 1
      %s31 = scalar_select %p28, %s29, %s30
      %p34 = pneg %p28
      %p35 = scmp.eq.s32.totalorder %s19, 1
      %p36 = por %p34, %p35
      %p37 = scmp.ne.s32.totalorder %s29, %s32
      %p38 = scmp.eq.s32.totalorder %s19, 0
      %p39 = por %p37, %p38
      %p40 = scmp.ne.s32.totalorder %s29, %s32
      %p41 = scmp.eq.s32.totalorder %s24, 1
      %p42 = por %p40, %p41
      %p43 = scmp.ne.s32.totalorder %s32, %s33
      %p44 = scmp.eq.s32.totalorder %s24, 0
      %p45 = por %p43, %p44
      %p46 = scmp.ne.s32.totalorder %s32, %s33
      %p47 = scmp.eq.s32.totalorder %s25, 1
      %p48 = por %p46, %p47
      %p50 = scmp.ne.s32.totalorder %s33, %s49
      %p51 = scmp.eq.s32.totalorder %s25, 0
      %p52 = por %p50, %p51
      %s54 = sadd.s32 %s53, 1
      %p57 = scmp.eq.s32.totalorder %s19, 1
      %p58 = scmp.ne.s32.totalorder %s53, %s55
      %p59 = scmp.eq.s32.totalorder %s19, 0
      %p60 = por %p58, %p59
      %p61 = scmp.ne.s32.totalorder %s53, %s55
      %p62 = scmp.eq.s32.totalorder %s24, 1
      %p63 = por %p61, %p62
      %p64 = scmp.ne.s32.totalorder %s55, %s56
      %p65 = scmp.eq.s32.totalorder %s24, 0
      %p66 = por %p64, %p65
      %p67 = scmp.ne.s32.totalorder %s55, %s56
      %p68 = scmp.eq.s32.totalorder %s25, 1
      %p69 = por %p67, %p68
      %p71 = scmp.ne.s32.totalorder %s56, %s70
      %p72 = scmp.eq.s32.totalorder %s25, 0
      %p73 = por %p71, %p72
      %s75 = sadd.s32 %s74, 1
      %p78 = scmp.eq.s32.totalorder %s19, 1
      %p79 = scmp.ne.s32.totalorder %s74, %s76
      %p80 = scmp.eq.s32.totalorder %s19, 0
      %p81 = por %p79, %p80
      %p82 = scmp.ne.s32.totalorder %s74, %s76
      %p83 = scmp.eq.s32.totalorder %s24, 1
      %p84 = por %p82, %p83
      %p85 = scmp.ne.s32.totalorder %s76, %s77
      %p86 = scmp.eq.s32.totalorder %s24, 0
      %p87 = por %p85, %p86
      %p88 = scmp.ne.s32.totalorder %s76, %s77
      %p89 = scmp.eq.s32.totalorder %s25, 1
      %p90 = por %p88, %p89
      %p92 = scmp.ne.s32.totalorder %s77, %s91
      %p93 = scmp.eq.s32.totalorder %s25, 0
      %p94 = por %p92, %p93
      %s96 = sadd.s32 %s95, 1
      %p99 = scmp.eq.s32.totalorder %s19, 1
      %p100 = scmp.ne.s32.totalorder %s95, %s97
      %p101 = scmp.eq.s32.totalorder %s19, 0
      %p102 = por %p100, %p101
      %p103 = scmp.ne.s32.totalorder %s95, %s97
      %p104 = scmp.eq.s32.totalorder %s24, 1
      %p105 = por %p103, %p104
      %p106 = scmp.ne.s32.totalorder %s97, %s98
      %p107 = scmp.eq.s32.totalorder %s24, 0
      %p108 = por %p106, %p107
      %p109 = scmp.ne.s32.totalorder %s97, %s98
      %p110 = scmp.eq.s32.totalorder %s25, 1
      %p111 = por %p109, %p110
      %p113 = scmp.ne.s32.totalorder %s98, %s112
      %p114 = scmp.eq.s32.totalorder %s25, 0
      %p115 = por %p113, %p114
      %s117 = sadd.s32 %s116, 1
      %p120 = scmp.eq.s32.totalorder %s19, 1
      %p121 = scmp.ne.s32.totalorder %s116, %s118
      %p122 = scmp.eq.s32.totalorder %s19, 0
      %p123 = por %p121, %p122
      %p124 = scmp.ne.s32.totalorder %s116, %s118
      %p125 = scmp.eq.s32.totalorder %s24, 1
      %p126 = por %p124, %p125
      %p127 = scmp.ne.s32.totalorder %s118, %s119
      %p128 = scmp.eq.s32.totalorder %s24, 0
      %p129 = por %p127, %p128
      %p130 = scmp.ne.s32.totalorder %s118, %s119
      %p131 = scmp.eq.s32.totalorder %s25, 1
      %p132 = por %p130, %p131
      %p134 = scmp.ne.s32.totalorder %s119, %s133
      %p135 = scmp.eq.s32.totalorder %s25, 0
      %p136 = por %p134, %p135
      %s138 = sadd.s32 %s137, 1
      %p141 = scmp.eq.s32.totalorder %s19, 1
      %p142 = scmp.ne.s32.totalorder %s137, %s139
      %p143 = scmp.eq.s32.totalorder %s19, 0
      %p144 = por %p142, %p143
      %p145 = scmp.ne.s32.totalorder %s137, %s139
      %p146 = scmp.eq.s32.totalorder %s24, 1
      %p147 = por %p145, %p146
      %p148 = scmp.ne.s32.totalorder %s139, %s140
      %p149 = scmp.eq.s32.totalorder %s24, 0
      %p150 = por %p148, %p149
      %p151 = scmp.ne.s32.totalorder %s139, %s140
      %p152 = scmp.eq.s32.totalorder %s25, 1
      %p153 = por %p151, %p152
      %p155 = scmp.ne.s32.totalorder %s140, %s154
      %p156 = scmp.eq.s32.totalorder %s25, 0
      %p157 = por %p155, %p156
      %s159 = sadd.s32 %s158, 1
      %p162 = scmp.eq.s32.totalorder %s19, 1
      %p163 = scmp.ne.s32.totalorder %s158, %s160
      %p164 = scmp.eq.s32.totalorder %s19, 0
      %p165 = por %p163, %p164
      %p166 = scmp.ne.s32.totalorder %s158, %s160
      %p167 = scmp.eq.s32.totalorder %s24, 1
      %p168 = por %p166, %p167
      %p169 = scmp.ne.s32.totalorder %s160, %s161
      %p170 = scmp.eq.s32.totalorder %s24, 0
      %p171 = por %p169, %p170
      %p172 = scmp.ne.s32.totalorder %s160, %s161
      %p173 = scmp.eq.s32.totalorder %s25, 1
      %p174 = por %p172, %p173
      %p176 = scmp.ne.s32.totalorder %s161, %s175
      %p177 = scmp.eq.s32.totalorder %s25, 0
      %p178 = por %p176, %p177
      %s179 = ssub.s32 %s19, %s26
      %p180 = scmp.eq.s32.totalorder %s179, 0
      %s182 = sadd.s32 %s181, 1
      %s183 = scalar_select %p180, %s181, %s182
      %p186 = pneg %p180
      %p187 = scmp.eq.s32.totalorder %s19, 1
      %p188 = por %p186, %p187
      %p189 = scmp.ne.s32.totalorder %s181, %s184
      %p190 = scmp.eq.s32.totalorder %s19, 0
      %p191 = por %p189, %p190
      %p192 = scmp.ne.s32.totalorder %s181, %s184
      %p193 = scmp.eq.s32.totalorder %s24, 1
      %p194 = por %p192, %p193
      %p195 = scmp.ne.s32.totalorder %s184, %s185
      %p196 = scmp.eq.s32.totalorder %s24, 0
      %p197 = por %p195, %p196
      %p198 = scmp.ne.s32.totalorder %s184, %s185
      %p199 = scmp.eq.s32.totalorder %s25, 1
      %p200 = por %p198, %p199
      %p202 = scmp.ne.s32.totalorder %s185, %s201
      %p203 = scmp.eq.s32.totalorder %s25, 0
      %p204 = por %p202, %p203
      %p205 = scmp.le.s32.totalorder 1, %s19
      %p206 = scmp.lt.s32.totalorder %s19, 3
      %p207 = pnand %p205, %p206
      %p208 = pneg %p207
      // Predicated region
      $region9: #{tpu_custom_call.1} parent=5 // pred_check
        _
      $region10: #{tpu_custom_call.1} parent=5 // pred_check_branch
        %210 = sbr.rel (%p207) target = $region12
      $region11: #{tpu_custom_call.1} parent=5 // pred_region
        %s211 = ssub.s32 %s19, 1
        // Predicated region
        $region13: #{tpu_custom_call.1} parent=11 // pred_check
          %p212 = pneg %p66
        $region14: #{tpu_custom_call.1} parent=11 // pred_check_branch
          %214 = sbr.rel (%p212) target = $region16
        $region15: #{tpu_custom_call.1} parent=11 // pred_region
          _
        $region16: #{tpu_custom_call.1} parent=11 // pred_fallthru
          _
        // Predicated region
        $region17: #{tpu_custom_call.1} parent=11 // pred_check
          %p215 = pneg %p87
        $region18: #{tpu_custom_call.1} parent=11 // pred_check_branch
          %217 = sbr.rel (%p215) target = $region20
        $region19: #{tpu_custom_call.1} parent=11 // pred_region
          _
        $region20: #{tpu_custom_call.1} parent=11 // pred_fallthru
          _
        // Predicated region
        $region21: #{tpu_custom_call.1} parent=11 // pred_check
          %p218 = pneg %p108
        $region22: #{tpu_custom_call.1} parent=11 // pred_check_branch
          %220 = sbr.rel (%p218) target = $region24
        $region23: #{tpu_custom_call.1} parent=11 // pred_region
          _
        $region24: #{tpu_custom_call.1} parent=11 // pred_fallthru
          _
        // Predicated region
        $region25: #{tpu_custom_call.1} parent=11 // pred_check
          %p221 = pneg %p129
        $region26: #{tpu_custom_call.1} parent=11 // pred_check_branch
          %223 = sbr.rel (%p221) target = $region28
        $region27: #{tpu_custom_call.1} parent=11 // pred_region
          _
        $region28: #{tpu_custom_call.1} parent=11 // pred_fallthru
          _
        // Predicated region
        $region29: #{tpu_custom_call.1} parent=11 // pred_check
          %p224 = pneg %p150
        $region30: #{tpu_custom_call.1} parent=11 // pred_check_branch
          %226 = sbr.rel (%p224) target = $region32
        $region31: #{tpu_custom_call.1} parent=11 // pred_region
          _
        $region32: #{tpu_custom_call.1} parent=11 // pred_fallthru
          _
        // Predicated region
        $region33: #{tpu_custom_call.1} parent=11 // pred_check
          %p227 = pneg %p171
        $region34: #{tpu_custom_call.1} parent=11 // pred_check_branch
          %229 = sbr.rel (%p227) target = $region36
        $region35: #{tpu_custom_call.1} parent=11 // pred_region
          _
        $region36: #{tpu_custom_call.1} parent=11 // pred_fallthru
          _
      $region12: #{tpu_custom_call.1} parent=5 // pred_fallthru
        _
      %p230 = scmp.lt.s32.totalorder %s19, 2
      // Predicated region
      $region37: #{tpu_custom_call.1} parent=5 // pred_check
        %p231 = pneg %p230
      $region38: #{tpu_custom_call.1} parent=5 // pred_check_branch
        %233 = sbr.rel (%p231) target = $region40
      $region39: #{tpu_custom_call.1} parent=5 // pred_region
        // Predicated region
        $region41: #{tpu_custom_call.1} parent=39 // pred_check
          %p234 = pneg %p39
        $region42: #{tpu_custom_call.1} parent=39 // pred_check_branch
          %236 = sbr.rel (%p234) target = $region44
        $region43: #{tpu_custom_call.1} parent=39 // pred_region
          %s237 = sand.u32 %s29, 1
          %s238 = scalar_lea.sflag [#allocation4], %s237
          %s239 = sand.u32 %s29, 1
          %s240 = smul.addr %s239, 128
          %s241 = scalar_lea.vmem [#allocation3], %s240
          %s242 = smul.u32 2, %s19
          %s244 = ssub.s32 2048, 2048
          %245 = vsyncadd %s238, %s244
          %s246 = smul.addr %s242, 8
          %s247 = smul.addr %s246, 128
          %s248 = scalar_lea.hbm %s0, %s247
          %s249 = sshll.u32 %s241, 4
          %s250 = int_to_ptr.vmem [resolvable:$true] %s249
          %255 = dma.hbm_to_vmem [thread:$0]  %s248, 2048, %s250, %s238, 128, 128, 8
        $region44: #{tpu_custom_call.1} parent=39 // pred_fallthru
          _
      $region40: #{tpu_custom_call.1} parent=5 // pred_fallthru
        _
      %p256 = scmp.le.s32.totalorder 1, %s19
      %p257 = scmp.lt.s32.totalorder %s19, 3
      %p258 = pnand %p256, %p257
      %p259 = pneg %p258
      // Predicated region
      $region45: #{tpu_custom_call.1} parent=5 // pred_check
        _
      $region46: #{tpu_custom_call.1} parent=5 // pred_check_branch
        %261 = sbr.rel (%p258) target = $region48
      $region47: #{tpu_custom_call.1} parent=5 // pred_region
        %s262 = ssub.s32 %s19, 1
        %s263 = sand.u32 %s32, 1
        %s264 = scalar_lea.sflag [#allocation4], %s263
        %s265 = sand.u32 %s32, 1
        %s266 = smul.addr %s265, 128
        %s267 = scalar_lea.vmem [#allocation3], %s266
        // Predicated region
        $region49: #{tpu_custom_call.1} parent=47 // pred_check
          %p268 = pneg %p45
        $region50: #{tpu_custom_call.1} parent=47 // pred_check_branch
          %270 = sbr.rel (%p268) target = $region52
        $region51: #{tpu_custom_call.1} parent=47 // pred_region
          %271 = dma.done %s264, 2048
        $region52: #{tpu_custom_call.1} parent=47 // pred_fallthru
          _
        %s272 = sand.u32 %s32, 1
        %s273 = scalar_lea.sflag [#allocation4], %s272
        %s274 = sand.u32 %s32, 1
        %s275 = smul.addr %s274, 128
        %s276 = scalar_lea.vmem [#allocation3], %s275
        %p277 = pneg %p45
        %p278 = pneg %p42
        %p279 = pneg %p66
        %p280 = pneg %p63
        %p281 = pneg %p87
        %p282 = pneg %p84
        %p283 = pneg %p108
        %p284 = pneg %p105
        %p285 = pneg %p129
        %p286 = pneg %p126
        %p287 = pneg %p150
        %p288 = pneg %p147
        %p289 = pneg %p171
        %p290 = pneg %p168
        %p291 = pneg %p197
        %p292 = pneg %p194
        %s293 = sand.u32 %s184, 1
        %s294 = scalar_lea.sflag [#allocation5], %s293
        %s295 = sand.u32 %s184, 1
        %s296 = smul.addr %s295, 128
        %s297 = scalar_lea.vmem [#allocation6], %s296
        %s298 = smul.u32 2, %s24
        %s299 = smul.u32 2, %s24
        %v301 = vld [vmem:[%s267] sm:$0xff]
        %v302 = vld [vmem:[%s267 + $0x8] sm:$0xff]
        %v303 = vld [vmem:[%s267 + $0x10] sm:$0xff]
        %v304 = vld [vmem:[%s267 + $0x18] sm:$0xff]
        %v305 = vld [vmem:[%s267 + $0x20] sm:$0xff]
        %v306 = vld [vmem:[%s267 + $0x28] sm:$0xff]
        %v307 = vld [vmem:[%s267 + $0x30] sm:$0xff]
        %v308 = vld [vmem:[%s267 + $0x38] sm:$0xff]
        %v309 = vld [vmem:[%s267 + $0x40] sm:$0xff]
        %v310 = vld [vmem:[%s267 + $0x48] sm:$0xff]
        %v311 = vld [vmem:[%s267 + $0x50] sm:$0xff]
        %v312 = vld [vmem:[%s267 + $0x58] sm:$0xff]
        %v313 = vld [vmem:[%s267 + $0x60] sm:$0xff]
        %v314 = vld [vmem:[%s267 + $0x68] sm:$0xff]
        %v315 = vld [vmem:[%s267 + $0x70] sm:$0xff]
        %v316 = vld [vmem:[%s267 + $0x78] sm:$0xff]
        %v317 = vpack.c.bf16 %v301, %v301
        %v318 = vpack.c.bf16 %v302, %v302
        %v319 = vpack.c.bf16 %v303, %v303
        %v320 = vpack.c.bf16 %v304, %v304
        %v321 = vpack.c.bf16 %v305, %v305
        %v322 = vpack.c.bf16 %v306, %v306
        %v323 = vpack.c.bf16 %v307, %v307
        %v324 = vpack.c.bf16 %v308, %v308
        %v325 = vpack.c.bf16 %v309, %v309
        %v326 = vpack.c.bf16 %v310, %v310
        %v327 = vpack.c.bf16 %v311, %v311
        %v328 = vpack.c.bf16 %v312, %v312
        %v329 = vpack.c.bf16 %v313, %v313
        %v330 = vpack.c.bf16 %v314, %v314
        %v331 = vpack.c.bf16 %v315, %v315
        %v332 = vpack.c.bf16 %v316, %v316
        %v333 = vld [vmem:[%s1] sm:$0xf]
        %v334 = vld [vmem:[%s1 + $0x4] sm:$0xf]
        %v335 = vld [vmem:[%s1 + $0x8] sm:$0xf]
        %v336 = vld [vmem:[%s1 + $0xc] sm:$0xf]
        %v337 = vld [vmem:[%s1 + $0x10] sm:$0xf]
        %v338 = vld [vmem:[%s1 + $0x14] sm:$0xf]
        %v339 = vld [vmem:[%s1 + $0x18] sm:$0xf]
        %v340 = vld [vmem:[%s1 + $0x1c] sm:$0xf]
        %v341 = vld [vmem:[%s1 + $0x20] sm:$0xf]
        %v342 = vld [vmem:[%s1 + $0x24] sm:$0xf]
        %v343 = vld [vmem:[%s1 + $0x28] sm:$0xf]
        %v344 = vld [vmem:[%s1 + $0x2c] sm:$0xf]
        %v345 = vld [vmem:[%s1 + $0x30] sm:$0xf]
        %v346 = vld [vmem:[%s1 + $0x34] sm:$0xf]
        %v347 = vld [vmem:[%s1 + $0x38] sm:$0xf]
        %v348 = vld [vmem:[%s1 + $0x3c] sm:$0xf]
        %v349 = vld [vmem:[%s4] sm:$0x1]
        %v351 = vlaneseq
        %v352 = vshrl.u32 %v351, 7
        %v353 = vsub.s32 0, %v352
        %v354 = vrot.slane %v349, %v353
        %v372 = vunpack.c.l.b16 %v317
        %v373 = vunpack.c.l.b16 %v318
        %v374 = vunpack.c.l.b16 %v319
        %v375 = vunpack.c.l.b16 %v320
        %v376 = vunpack.c.l.b16 %v321
        %v377 = vunpack.c.l.b16 %v322
        %v378 = vunpack.c.l.b16 %v323
        %v379 = vunpack.c.l.b16 %v324
        %v380 = vunpack.c.l.b16 %v325
        %v381 = vunpack.c.l.b16 %v326
        %v382 = vunpack.c.l.b16 %v327
        %v383 = vunpack.c.l.b16 %v328
        %v384 = vunpack.c.l.b16 %v329
        %v385 = vunpack.c.l.b16 %v330
        %v386 = vunpack.c.l.b16 %v331
        %v387 = vunpack.c.l.b16 %v332
        %v388 = vpack.c.b16 %v373, %v372
        %v389 = vpack.c.b16 %v375, %v374
        %v390 = vpack.c.b16 %v377, %v376
        %v391 = vpack.c.b16 %v379, %v378
        %v392 = vpack.c.b16 %v381, %v380
        %v393 = vpack.c.b16 %v383, %v382
        %v394 = vpack.c.b16 %v385, %v384
        %v395 = vpack.c.b16 %v387, %v386
        %v420 = vunpack.c.l.b16 %v333
        %v421 = vunpack.c.l.b16 %v334
        %v422 = vunpack.c.l.b16 %v335
        %v423 = vunpack.c.l.b16 %v336
        %v424 = vunpack.c.l.b16 %v337
        %v425 = vunpack.c.l.b16 %v338
        %v426 = vunpack.c.l.b16 %v339
        %v427 = vunpack.c.l.b16 %v340
        %v428 = vunpack.c.l.b16 %v341
        %v429 = vunpack.c.l.b16 %v342
        %v430 = vunpack.c.l.b16 %v343
        %v431 = vunpack.c.l.b16 %v344
        %v432 = vunpack.c.l.b16 %v345
        %v433 = vunpack.c.l.b16 %v346
        %v434 = vunpack.c.l.b16 %v347
        %v435 = vunpack.c.l.b16 %v348
        %v436 = vpack.c.b16 %v421, %v420
        %v437 = vpack.c.b16 %v423, %v422
        %v438 = vpack.c.b16 %v425, %v424
        %v439 = vpack.c.b16 %v427, %v426
        %v440 = vpack.c.b16 %v429, %v428
        %v441 = vpack.c.b16 %v431, %v430
        %v442 = vpack.c.b16 %v433, %v432
        %v443 = vpack.c.b16 %v435, %v434
        %452 = vmatprep.subr.bf16.mxu0 0
        %453 = vmatpush1.bf16.msra.mxu0 %v436
        %454 = vmatprep.subr.bf16.mxu0 0
        %455 = vmatpush1.bf16.msra.mxu0 %v437
        %456 = vmatprep.subr.bf16.mxu0 0
        %457 = vmatpush1.bf16.msra.mxu0 %v438
        %458 = vmatprep.subr.bf16.mxu0 0
        %459 = vmatpush1.bf16.msra.mxu0 %v439
        %460 = vmatprep.subr.bf16.mxu0 0
        %461 = vmatpush1.bf16.msra.mxu0 %v440
        %462 = vmatprep.subr.bf16.mxu0 0
        %463 = vmatpush1.bf16.msra.mxu0 %v441
        %464 = vmatprep.subr.bf16.mxu0 0
        %465 = vmatpush1.bf16.msra.mxu0 %v442
        %466 = vmatprep.subr.bf16.mxu0 0
        %467 = vmatpush1.bf16.msra.mxu0 %v443
        %468 = vmatprep.subr.bf16.mxu0 0
        %469 = vmatpush1.bf16.msra.mxu0 0
        %470 = vmatprep.subr.bf16.mxu0 0
        %471 = vmatpush1.bf16.msra.mxu0 0
        %472 = vmatprep.subr.bf16.mxu0 0
        %473 = vmatpush1.bf16.msra.mxu0 0
        %474 = vmatprep.subr.bf16.mxu0 0
        %475 = vmatpush1.bf16.msra.mxu0 0
        %476 = vmatprep.subr.bf16.mxu0 0
        %477 = vmatpush1.bf16.msra.mxu0 0
        %478 = vmatprep.subr.bf16.mxu0 0
        %479 = vmatpush1.bf16.msra.mxu0 0
        %480 = vmatprep.subr.bf16.mxu0 0
        %481 = vmatpush1.bf16.msra.mxu0 0
        %482 = vmatprep.subr.bf16.mxu0 0
        %483 = vmatpush1.bf16.msra.mxu0 0
        %484 = vmatprep.mubr.bf16.mxu0 0
        %485 = vmatmul.mubr.bf16.gmra.mrb[0].mxu0 %v388
        %v486 = vpop.f32.mrb[0].mxu0
        %v487 = vadd.f32 %v354, %v486
        %v488 = vpop.f32.mrb[0].mxu0
        %v489 = vpop.f32.mrb[0].mxu0
        %v490 = vadd.f32 %v354, %v489
        %v491 = vpop.f32.mrb[0].mxu0
        %492 = vmatprep.mubr.bf16.mxu0 0
        %493 = vmatmul.mubr.bf16.gmra.mrb[0].mxu0 %v389
        %v494 = vpop.f32.mrb[0].mxu0
        %v495 = vadd.f32 %v354, %v494
        %v496 = vpop.f32.mrb[0].mxu0
        %v497 = vpop.f32.mrb[0].mxu0
        %v498 = vadd.f32 %v354, %v497
        %v499 = vpop.f32.mrb[0].mxu0
        %500 = vmatprep.mubr.bf16.mxu0 0
        %501 = vmatmul.mubr.bf16.gmra.mrb[0].mxu0 %v390
        %v502 = vpop.f32.mrb[0].mxu0
        %v503 = vadd.f32 %v354, %v502
        %v504 = vpop.f32.mrb[0].mxu0
        %v505 = vpop.f32.mrb[0].mxu0
        %v506 = vadd.f32 %v354, %v505
        %v507 = vpop.f32.mrb[0].mxu0
        %508 = vmatprep.mubr.bf16.mxu0 0
        %509 = vmatmul.mubr.bf16.gmra.mrb[0].mxu0 %v391
        %v510 = vpop.f32.mrb[0].mxu0
        %v511 = vadd.f32 %v354, %v510
        %v512 = vpop.f32.mrb[0].mxu0
        %v513 = vpop.f32.mrb[0].mxu0
        %v514 = vadd.f32 %v354, %v513
        %v515 = vpop.f32.mrb[0].mxu0
        %516 = vmatprep.mubr.bf16.mxu0 0
        %517 = vmatmul.mubr.bf16.gmra.mrb[0].mxu0 %v392
        %v518 = vpop.f32.mrb[0].mxu0
        %v519 = vadd.f32 %v354, %v518
        %v520 = vpop.f32.mrb[0].mxu0
        %v521 = vpop.f32.mrb[0].mxu0
        %v522 = vadd.f32 %v354, %v521
        %v523 = vpop.f32.mrb[0].mxu0
        %524 = vmatprep.mubr.bf16.mxu0 0
        %525 = vmatmul.mubr.bf16.gmra.mrb[0].mxu0 %v393
        %v526 = vpop.f32.mrb[0].mxu0
        %v527 = vadd.f32 %v354, %v526
        %v528 = vpop.f32.mrb[0].mxu0
        %v529 = vpop.f32.mrb[0].mxu0
        %v530 = vadd.f32 %v354, %v529
        %v531 = vpop.f32.mrb[0].mxu0
        %532 = vmatprep.mubr.bf16.mxu0 0
        %533 = vmatmul.mubr.bf16.gmra.mrb[0].mxu0 %v394
        %v534 = vpop.f32.mrb[0].mxu0
        %v535 = vadd.f32 %v354, %v534
        %v536 = vpop.f32.mrb[0].mxu0
        %v537 = vpop.f32.mrb[0].mxu0
        %v538 = vadd.f32 %v354, %v537
        %v539 = vpop.f32.mrb[0].mxu0
        %540 = vmatprep.mubr.bf16.mxu0 0
        %541 = vmatmul.mubr.bf16.gmra.mrb[0].mxu0 %v395
        %v542 = vpop.f32.mrb[0].mxu0
        %v543 = vadd.f32 %v354, %v542
        %v544 = vpop.f32.mrb[0].mxu0
        %v545 = vpop.f32.mrb[0].mxu0
        %v546 = vadd.f32 %v354, %v545
        %v547 = vpop.f32.mrb[0].mxu0
        %548 = vdwg.mxu0
        %v549 = vmax.f32 %v487, 0.0
        %v550 = vmax.f32 %v490, 0.0
        %v551 = vmax.f32 %v495, 0.0
        %v552 = vmax.f32 %v498, 0.0
        %v553 = vmax.f32 %v503, 0.0
        %v554 = vmax.f32 %v506, 0.0
        %v555 = vmax.f32 %v511, 0.0
        %v556 = vmax.f32 %v514, 0.0
        %v557 = vmax.f32 %v519, 0.0
        %v558 = vmax.f32 %v522, 0.0
        %v559 = vmax.f32 %v527, 0.0
        %v560 = vmax.f32 %v530, 0.0
        %v561 = vmax.f32 %v535, 0.0
        %v562 = vmax.f32 %v538, 0.0
        %v563 = vmax.f32 %v543, 0.0
        %v564 = vmax.f32 %v546, 0.0
        %v581 = vrot.slane %v549, 7
        %v582 = vrot.slane %v550, 7
        %v583 = vrot.slane %v551, 7
        %v584 = vrot.slane %v552, 7
        %v585 = vrot.slane %v553, 7
        %v586 = vrot.slane %v554, 7
        %v587 = vrot.slane %v555, 7
        %v588 = vrot.slane %v556, 7
        %v589 = vrot.slane %v557, 7
        %v590 = vrot.slane %v558, 7
        %v591 = vrot.slane %v559, 7
        %v592 = vrot.slane %v560, 7
        %v593 = vrot.slane %v561, 7
        %v594 = vrot.slane %v562, 7
        %v595 = vrot.slane %v563, 7
        %v596 = vrot.slane %v564, 7
        %vm613 = vcmask 1040384
        %v614 = vsel %vm613, 0.0, %v581
        %v615 = vsel %vm613, 0.0, %v582
        %v616 = vsel %vm613, 0.0, %v583
        %v617 = vsel %vm613, 0.0, %v584
        %v618 = vsel %vm613, 0.0, %v585
        %v619 = vsel %vm613, 0.0, %v586
        %v620 = vsel %vm613, 0.0, %v587
        %v621 = vsel %vm613, 0.0, %v588
        %v622 = vsel %vm613, 0.0, %v589
        %v623 = vsel %vm613, 0.0, %v590
        %v624 = vsel %vm613, 0.0, %v591
        %v625 = vsel %vm613, 0.0, %v592
        %v626 = vsel %vm613, 0.0, %v593
        %v627 = vsel %vm613, 0.0, %v594
        %v628 = vsel %vm613, 0.0, %v595
        %v629 = vsel %vm613, 0.0, %v596
        %v630 = vrot.slane %v549, 1
        %v631 = vrot.slane %v550, 1
        %v632 = vrot.slane %v551, 1
        %v633 = vrot.slane %v552, 1
        %v634 = vrot.slane %v553, 1
        %v635 = vrot.slane %v554, 1
        %v636 = vrot.slane %v555, 1
        %v637 = vrot.slane %v556, 1
        %v638 = vrot.slane %v557, 1
        %v639 = vrot.slane %v558, 1
        %v640 = vrot.slane %v559, 1
        %v641 = vrot.slane %v560, 1
        %v642 = vrot.slane %v561, 1
        %v643 = vrot.slane %v562, 1
        %v644 = vrot.slane %v563, 1
        %v645 = vrot.slane %v564, 1
        %vm662 = vcmask 1046528
        %v663 = vsel %vm662, %v630, 0.0
        %v664 = vsel %vm662, %v631, 0.0
        %v665 = vsel %vm662, %v632, 0.0
        %v666 = vsel %vm662, %v633, 0.0
        %v667 = vsel %vm662, %v634, 0.0
        %v668 = vsel %vm662, %v635, 0.0
        %v669 = vsel %vm662, %v636, 0.0
        %v670 = vsel %vm662, %v637, 0.0
        %v671 = vsel %vm662, %v638, 0.0
        %v672 = vsel %vm662, %v639, 0.0
        %v673 = vsel %vm662, %v640, 0.0
        %v674 = vsel %vm662, %v641, 0.0
        %v675 = vsel %vm662, %v642, 0.0
        %v676 = vsel %vm662, %v643, 0.0
        %v677 = vsel %vm662, %v644, 0.0
        %v678 = vsel %vm662, %v645, 0.0
        %679 = vrot.lane.b32.xlu0 %v549, 32
        %v680 = vpop.permute.xlu0 %679
        %681 = vrot.lane.b32.xlu0 %v550, 32
        %v682 = vpop.permute.xlu0 %681
        %683 = vrot.lane.b32.xlu0 %v551, 32
        %v684 = vpop.permute.xlu0 %683
        %685 = vrot.lane.b32.xlu0 %v552, 32
        %v686 = vpop.permute.xlu0 %685
        %687 = vrot.lane.b32.xlu0 %v553, 32
        %v688 = vpop.permute.xlu0 %687
        %689 = vrot.lane.b32.xlu0 %v554, 32
        %v690 = vpop.permute.xlu0 %689
        %691 = vrot.lane.b32.xlu0 %v555, 32
        %v692 = vpop.permute.xlu0 %691
        %693 = vrot.lane.b32.xlu0 %v556, 32
        %v694 = vpop.permute.xlu0 %693
        %695 = vrot.lane.b32.xlu0 %v557, 32
        %v696 = vpop.permute.xlu0 %695
        %697 = vrot.lane.b32.xlu0 %v558, 32
        %v698 = vpop.permute.xlu0 %697
        %699 = vrot.lane.b32.xlu0 %v559, 32
        %v700 = vpop.permute.xlu0 %699
        %701 = vrot.lane.b32.xlu0 %v560, 32
        %v702 = vpop.permute.xlu0 %701
        %703 = vrot.lane.b32.xlu0 %v561, 32
        %v704 = vpop.permute.xlu0 %703
        %705 = vrot.lane.b32.xlu0 %v562, 32
        %v706 = vpop.permute.xlu0 %705
        %707 = vrot.lane.b32.xlu0 %v563, 32
        %v708 = vpop.permute.xlu0 %707
        %709 = vrot.lane.b32.xlu0 %v564, 32
        %v710 = vpop.permute.xlu0 %709
        %743 = vrot.lane.b32.xlu0 %v663, 64
        %v744 = vpop.permute.xlu0 %743
        %745 = vrot.lane.b32.xlu0 %v664, 64
        %v746 = vpop.permute.xlu0 %745
        %747 = vrot.lane.b32.xlu0 %v665, 64
        %v748 = vpop.permute.xlu0 %747
        %749 = vrot.lane.b32.xlu0 %v666, 64
        %v750 = vpop.permute.xlu0 %749
        %751 = vrot.lane.b32.xlu0 %v667, 64
        %v752 = vpop.permute.xlu0 %751
        %753 = vrot.lane.b32.xlu0 %v668, 64
        %v754 = vpop.permute.xlu0 %753
        %755 = vrot.lane.b32.xlu0 %v669, 64
        %v756 = vpop.permute.xlu0 %755
        %757 = vrot.lane.b32.xlu0 %v670, 64
        %v758 = vpop.permute.xlu0 %757
        %759 = vrot.lane.b32.xlu0 %v671, 64
        %v760 = vpop.permute.xlu0 %759
        %761 = vrot.lane.b32.xlu0 %v672, 64
        %v762 = vpop.permute.xlu0 %761
        %763 = vrot.lane.b32.xlu0 %v673, 64
        %v764 = vpop.permute.xlu0 %763
        %765 = vrot.lane.b32.xlu0 %v674, 64
        %v766 = vpop.permute.xlu0 %765
        %767 = vrot.lane.b32.xlu0 %v675, 64
        %v768 = vpop.permute.xlu0 %767
        %769 = vrot.lane.b32.xlu0 %v676, 64
        %v770 = vpop.permute.xlu0 %769
        %771 = vrot.lane.b32.xlu0 %v677, 64
        %v772 = vpop.permute.xlu0 %771
        %773 = vrot.lane.b32.xlu0 %v678, 64
        %v774 = vpop.permute.xlu0 %773
        %vm791 = vcmask 261120
        %v792 = vsel %vm791, %v614, %v680
        %v793 = vsel %vm791, %v615, %v682
        %v794 = vsel %vm791, %v616, %v684
        %v795 = vsel %vm791, %v617, %v686
        %v796 = vsel %vm791, %v618, %v688
        %v797 = vsel %vm791, %v619, %v690
        %v798 = vsel %vm791, %v620, %v692
        %v799 = vsel %vm791, %v621, %v694
        %v800 = vsel %vm791, %v622, %v696
        %v801 = vsel %vm791, %v623, %v698
        %v802 = vsel %vm791, %v624, %v700
        %v803 = vsel %vm791, %v625, %v702
        %v804 = vsel %vm791, %v626, %v704
        %v805 = vsel %vm791, %v627, %v706
        %v806 = vsel %vm791, %v628, %v708
        %v807 = vsel %vm791, %v629, %v710
        %vm808 = vcmask 523264
        %v809 = vsel %vm808, %v792, %v744
        %v810 = vsel %vm808, %v793, %v746
        %v811 = vsel %vm808, %v794, %v748
        %v812 = vsel %vm808, %v795, %v750
        %v813 = vsel %vm808, %v796, %v752
        %v814 = vsel %vm808, %v797, %v754
        %v815 = vsel %vm808, %v798, %v756
        %v816 = vsel %vm808, %v799, %v758
        %v817 = vsel %vm808, %v800, %v760
        %v818 = vsel %vm808, %v801, %v762
        %v819 = vsel %vm808, %v802, %v764
        %v820 = vsel %vm808, %v803, %v766
        %v821 = vsel %vm808, %v804, %v768
        %v822 = vsel %vm808, %v805, %v770
        %v823 = vsel %vm808, %v806, %v772
        %v824 = vsel %vm808, %v807, %v774
        %v825 = vpack.c.bf16 %v810, %v809
        %v826 = vpack.c.bf16 %v812, %v811
        %v827 = vpack.c.bf16 %v814, %v813
        %v828 = vpack.c.bf16 %v816, %v815
        %v829 = vpack.c.bf16 %v818, %v817
        %v830 = vpack.c.bf16 %v820, %v819
        %v831 = vpack.c.bf16 %v822, %v821
        %v832 = vpack.c.bf16 %v824, %v823
        %v833 = vld [vmem:[%s2] sm:$0xf]
        %v834 = vld [vmem:[%s2 + $0x4] sm:$0xf]
        %v835 = vld [vmem:[%s2 + $0x8] sm:$0xf]
        %v836 = vld [vmem:[%s2 + $0xc] sm:$0xf]
        %v837 = vld [vmem:[%s2 + $0x10] sm:$0xf]
        %v838 = vld [vmem:[%s2 + $0x14] sm:$0xf]
        %v839 = vld [vmem:[%s2 + $0x18] sm:$0xf]
        %v840 = vld [vmem:[%s2 + $0x1c] sm:$0xf]
        %v841 = vld [vmem:[%s2 + $0x20] sm:$0xf]
        %v842 = vld [vmem:[%s2 + $0x24] sm:$0xf]
        %v843 = vld [vmem:[%s2 + $0x28] sm:$0xf]
        %v844 = vld [vmem:[%s2 + $0x2c] sm:$0xf]
        %v857 = vunpack.c.l.b16 %v833
        %v858 = vunpack.c.l.b16 %v834
        %v859 = vunpack.c.l.b16 %v835
        %v860 = vunpack.c.l.b16 %v836
        %v861 = vunpack.c.l.b16 %v837
        %v862 = vunpack.c.l.b16 %v838
        %v863 = vunpack.c.l.b16 %v839
        %v864 = vunpack.c.l.b16 %v840
        %v865 = vunpack.c.l.b16 %v841
        %v866 = vunpack.c.l.b16 %v842
        %v867 = vunpack.c.l.b16 %v843
        %v868 = vunpack.c.l.b16 %v844
        %v869 = vpack.c.b16 %v858, %v857
        %v870 = vpack.c.b16 %v860, %v859
        %v871 = vpack.c.b16 %v862, %v861
        %v872 = vpack.c.b16 %v864, %v863
        %v873 = vpack.c.b16 %v866, %v865
        %v874 = vpack.c.b16 %v868, %v867
        %vm881 = vcmask 785408
        %v883 = vsel %vm881, %v825, 0
        %v886 = vsel %vm881, %v826, 0
        %v889 = vsel %vm881, %v827, 0
        %v892 = vsel %vm881, %v828, 0
        %v895 = vsel %vm881, %v829, 0
        %v898 = vsel %vm881, %v830, 0
        %v901 = vsel %vm881, %v831, 0
        %v904 = vsel %vm881, %v832, 0
        %906 = vmatprep.subr.bf16.mxu0 0
        %907 = vmatpush1.bf16.msra.mxu0 %v869
        %908 = vmatprep.subr.bf16.mxu0 0
        %909 = vmatpush1.bf16.msra.mxu0 %v870
        %910 = vmatprep.subr.bf16.mxu0 0
        %911 = vmatpush1.bf16.msra.mxu0 %v871
        %912 = vmatprep.subr.bf16.mxu0 0
        %913 = vmatpush1.bf16.msra.mxu0 %v872
        %914 = vmatprep.subr.bf16.mxu0 0
        %915 = vmatpush1.bf16.msra.mxu0 %v873
        %916 = vmatprep.subr.bf16.mxu0 0
        %917 = vmatpush1.bf16.msra.mxu0 %v874
        %918 = vmatprep.subr.bf16.mxu0 0
        %919 = vmatpush1.bf16.msra.mxu0 0
        %920 = vmatprep.subr.bf16.mxu0 0
        %921 = vmatpush1.bf16.msra.mxu0 0
        %922 = vmatprep.subr.bf16.mxu0 0
        %923 = vmatpush1.bf16.msra.mxu0 0
        %924 = vmatprep.subr.bf16.mxu0 0
        %925 = vmatpush1.bf16.msra.mxu0 0
        %926 = vmatprep.subr.bf16.mxu0 0
        %927 = vmatpush1.bf16.msra.mxu0 0
        %928 = vmatprep.subr.bf16.mxu0 0
        %929 = vmatpush1.bf16.msra.mxu0 0
        %930 = vmatprep.subr.bf16.mxu0 0
        %931 = vmatpush1.bf16.msra.mxu0 0
        %932 = vmatprep.subr.bf16.mxu0 0
        %933 = vmatpush1.bf16.msra.mxu0 0
        %934 = vmatprep.subr.bf16.mxu0 0
        %935 = vmatpush1.bf16.msra.mxu0 0
        %936 = vmatprep.subr.bf16.mxu0 0
        %937 = vmatpush1.bf16.msra.mxu0 0
        %938 = vmatprep.mubr.bf16.mxu0 0
        %939 = vmatmul.mubr.bf16.gmra.mrb[0].mxu0 %v883
        %v940 = vpop.f32.mrb[0].mxu0
        %v941 = vadd.f32 0.0, %v940
        %v942 = vpop.f32.mrb[0].mxu0
        %v943 = vpop.f32.mrb[0].mxu0
        %v944 = vadd.f32 0.0, %v943
        %v945 = vpop.f32.mrb[0].mxu0
        %946 = vmatprep.mubr.bf16.mxu0 0
        %947 = vmatmul.mubr.bf16.gmra.mrb[0].mxu0 %v886
        %v948 = vpop.f32.mrb[0].mxu0
        %v949 = vadd.f32 0.0, %v948
        %v950 = vpop.f32.mrb[0].mxu0
        %v951 = vpop.f32.mrb[0].mxu0
        %v952 = vadd.f32 0.0, %v951
        %v953 = vpop.f32.mrb[0].mxu0
        %954 = vmatprep.mubr.bf16.mxu0 0
        %955 = vmatmul.mubr.bf16.gmra.mrb[0].mxu0 %v889
        %v956 = vpop.f32.mrb[0].mxu0
        %v957 = vadd.f32 0.0, %v956
        %v958 = vpop.f32.mrb[0].mxu0
        %v959 = vpop.f32.mrb[0].mxu0
        %v960 = vadd.f32 0.0, %v959
        %v961 = vpop.f32.mrb[0].mxu0
        %962 = vmatprep.mubr.bf16.mxu0 0
        %963 = vmatmul.mubr.bf16.gmra.mrb[0].mxu0 %v892
        %v964 = vpop.f32.mrb[0].mxu0
        %v965 = vadd.f32 0.0, %v964
        %v966 = vpop.f32.mrb[0].mxu0
        %v967 = vpop.f32.mrb[0].mxu0
        %v968 = vadd.f32 0.0, %v967
        %v969 = vpop.f32.mrb[0].mxu0
        %970 = vmatprep.mubr.bf16.mxu0 0
        %971 = vmatmul.mubr.bf16.gmra.mrb[0].mxu0 %v895
        %v972 = vpop.f32.mrb[0].mxu0
        %v973 = vadd.f32 0.0, %v972
        %v974 = vpop.f32.mrb[0].mxu0
        %v975 = vpop.f32.mrb[0].mxu0
        %v976 = vadd.f32 0.0, %v975
        %v977 = vpop.f32.mrb[0].mxu0
        %978 = vmatprep.mubr.bf16.mxu0 0
        %979 = vmatmul.mubr.bf16.gmra.mrb[0].mxu0 %v898
        %v980 = vpop.f32.mrb[0].mxu0
        %v981 = vadd.f32 0.0, %v980
        %v982 = vpop.f32.mrb[0].mxu0
        %v983 = vpop.f32.mrb[0].mxu0
        %v984 = vadd.f32 0.0, %v983
        %v985 = vpop.f32.mrb[0].mxu0
        %986 = vmatprep.mubr.bf16.mxu0 0
        %987 = vmatmul.mubr.bf16.gmra.mrb[0].mxu0 %v901
        %v988 = vpop.f32.mrb[0].mxu0
        %v989 = vadd.f32 0.0, %v988
        %v990 = vpop.f32.mrb[0].mxu0
        %v991 = vpop.f32.mrb[0].mxu0
        %v992 = vadd.f32 0.0, %v991
        %v993 = vpop.f32.mrb[0].mxu0
        %994 = vmatprep.mubr.bf16.mxu0 0
        %995 = vmatmul.mubr.bf16.gmra.mrb[0].mxu0 %v904
        %v996 = vpop.f32.mrb[0].mxu0
        %v997 = vadd.f32 0.0, %v996
        %v998 = vpop.f32.mrb[0].mxu0
        %v999 = vpop.f32.mrb[0].mxu0
        %v1000 = vadd.f32 0.0, %v999
        %v1001 = vpop.f32.mrb[0].mxu0
        %1002 = vdwg.mxu0
        %1019 = vrot.lane.b32.xlu0 %v941, 96
        %v1020 = vpop.permute.xlu0 %1019
        %1021 = vrot.lane.b32.xlu0 %v944, 96
        %v1022 = vpop.permute.xlu0 %1021
        %1023 = vrot.lane.b32.xlu0 %v949, 96
        %v1024 = vpop.permute.xlu0 %1023
        %1025 = vrot.lane.b32.xlu0 %v952, 96
        %v1026 = vpop.permute.xlu0 %1025
        %1027 = vrot.lane.b32.xlu0 %v957, 96
        %v1028 = vpop.permute.xlu0 %1027
        %1029 = vrot.lane.b32.xlu0 %v960, 96
        %v1030 = vpop.permute.xlu0 %1029
        %1031 = vrot.lane.b32.xlu0 %v965, 96
        %v1032 = vpop.permute.xlu0 %1031
        %1033 = vrot.lane.b32.xlu0 %v968, 96
        %v1034 = vpop.permute.xlu0 %1033
        %1035 = vrot.lane.b32.xlu0 %v973, 96
        %v1036 = vpop.permute.xlu0 %1035
        %1037 = vrot.lane.b32.xlu0 %v976, 96
        %v1038 = vpop.permute.xlu0 %1037
        %1039 = vrot.lane.b32.xlu0 %v981, 96
        %v1040 = vpop.permute.xlu0 %1039
        %1041 = vrot.lane.b32.xlu0 %v984, 96
        %v1042 = vpop.permute.xlu0 %1041
        %1043 = vrot.lane.b32.xlu0 %v989, 96
        %v1044 = vpop.permute.xlu0 %1043
        %1045 = vrot.lane.b32.xlu0 %v992, 96
        %v1046 = vpop.permute.xlu0 %1045
        %1047 = vrot.lane.b32.xlu0 %v997, 96
        %v1048 = vpop.permute.xlu0 %1047
        %1049 = vrot.lane.b32.xlu0 %v1000, 96
        %v1050 = vpop.permute.xlu0 %1049
        %1067 = vst.msk [vmem:[#allocation2] sm:$0xff] %vm791, %v1020
        %1068 = vst.msk [vmem:[#allocation2 + $0x8] sm:$0xff] %vm791, %v1022
        %1069 = vst.msk [vmem:[#allocation2 + $0x10] sm:$0xff] %vm791, %v1024
        %1070 = vst.msk [vmem:[#allocation2 + $0x18] sm:$0xff] %vm791, %v1026
        %1071 = vst.msk [vmem:[#allocation2 + $0x20] sm:$0xff] %vm791, %v1028
        %1072 = vst.msk [vmem:[#allocation2 + $0x28] sm:$0xff] %vm791, %v1030
        %1073 = vst.msk [vmem:[#allocation2 + $0x30] sm:$0xff] %vm791, %v1032
        %1074 = vst.msk [vmem:[#allocation2 + $0x38] sm:$0xff] %vm791, %v1034
        %1075 = vst.msk [vmem:[#allocation2 + $0x40] sm:$0xff] %vm791, %v1036
        %1076 = vst.msk [vmem:[#allocation2 + $0x48] sm:$0xff] %vm791, %v1038
        %1077 = vst.msk [vmem:[#allocation2 + $0x50] sm:$0xff] %vm791, %v1040
        %1078 = vst.msk [vmem:[#allocation2 + $0x58] sm:$0xff] %vm791, %v1042
        %1079 = vst.msk [vmem:[#allocation2 + $0x60] sm:$0xff] %vm791, %v1044
        %1080 = vst.msk [vmem:[#allocation2 + $0x68] sm:$0xff] %vm791, %v1046
        %1081 = vst.msk [vmem:[#allocation2 + $0x70] sm:$0xff] %vm791, %v1048
        %1082 = vst.msk [vmem:[#allocation2 + $0x78] sm:$0xff] %vm791, %v1050
        %s1083 = scalar_lea.vmem [#allocation2], 8
        %v1084 = vld [vmem:[%s1083] sm:$0xff]
        %v1085 = vld [vmem:[%s1083 + $0x8] sm:$0xff]
        %v1086 = vld [vmem:[%s1083 + $0x10] sm:$0xff]
        %v1087 = vld [vmem:[%s1083 + $0x18] sm:$0xff]
        %v1088 = vld [vmem:[%s1083 + $0x20] sm:$0xff]
        %v1089 = vld [vmem:[%s1083 + $0x28] sm:$0xff]
        %v1090 = vld [vmem:[%s1083 + $0x30] sm:$0xff]
        %v1091 = vld [vmem:[%s1083 + $0x40] sm:$0xff]
        %v1092 = vld [vmem:[%s1083 + $0x48] sm:$0xff]
        %v1093 = vld [vmem:[%s1083 + $0x50] sm:$0xff]
        %v1094 = vld [vmem:[%s1083 + $0x58] sm:$0xff]
        %v1095 = vld [vmem:[%s1083 + $0x60] sm:$0xff]
        %v1096 = vld [vmem:[%s1083 + $0x68] sm:$0xff]
        %v1097 = vld [vmem:[%s1083 + $0x70] sm:$0xff]
        %v1098 = vadd.f32 %v1084, %v941
        %v1099 = vadd.f32 %v1085, %v944
        %v1100 = vadd.f32 %v1086, %v949
        %v1101 = vadd.f32 %v1087, %v952
        %v1102 = vadd.f32 %v1088, %v957
        %v1103 = vadd.f32 %v1089, %v960
        %v1104 = vadd.f32 %v1090, %v965
        %v1105 = vadd.f32 %v1091, %v973
        %v1106 = vadd.f32 %v1092, %v976
        %v1107 = vadd.f32 %v1093, %v981
        %v1108 = vadd.f32 %v1094, %v984
        %v1109 = vadd.f32 %v1095, %v989
        %v1110 = vadd.f32 %v1096, %v992
        %v1111 = vadd.f32 %v1097, %v997
        %1112 = vst.msk [vmem:[%s1083] sm:$0xff] %vm791, %v1098
        %1113 = vst.msk [vmem:[%s1083 + $0x8] sm:$0xff] %vm791, %v1099
        %1114 = vst.msk [vmem:[%s1083 + $0x10] sm:$0xff] %vm791, %v1100
        %1115 = vst.msk [vmem:[%s1083 + $0x18] sm:$0xff] %vm791, %v1101
        %1116 = vst.msk [vmem:[%s1083 + $0x20] sm:$0xff] %vm791, %v1102
        %1117 = vst.msk [vmem:[%s1083 + $0x28] sm:$0xff] %vm791, %v1103
        %1118 = vst.msk [vmem:[%s1083 + $0x30] sm:$0xff] %vm791, %v1104
        %1119 = vst.msk [vmem:[%s1083 + $0x40] sm:$0xff] %vm791, %v1105
        %1120 = vst.msk [vmem:[%s1083 + $0x48] sm:$0xff] %vm791, %v1106
        %1121 = vst.msk [vmem:[%s1083 + $0x50] sm:$0xff] %vm791, %v1107
        %1122 = vst.msk [vmem:[%s1083 + $0x58] sm:$0xff] %vm791, %v1108
        %1123 = vst.msk [vmem:[%s1083 + $0x60] sm:$0xff] %vm791, %v1109
        %1124 = vst.msk [vmem:[%s1083 + $0x68] sm:$0xff] %vm791, %v1110
        %1125 = vst.msk [vmem:[%s1083 + $0x70] sm:$0xff] %vm791, %v1111
        %v1126 = vld [vmem:[#allocation2] sm:$0xff]
        %v1127 = vld [vmem:[#allocation2 + $0x8] sm:$0xff]
        %v1128 = vld [vmem:[#allocation2 + $0x10] sm:$0xff]
        %v1129 = vld [vmem:[#allocation2 + $0x18] sm:$0xff]
        %v1130 = vld [vmem:[#allocation2 + $0x20] sm:$0xff]
        %v1131 = vld [vmem:[#allocation2 + $0x28] sm:$0xff]
        %v1132 = vld [vmem:[#allocation2 + $0x30] sm:$0xff]
        %v1133 = vld [vmem:[#allocation2 + $0x40] sm:$0xff]
        %v1134 = vld [vmem:[#allocation2 + $0x48] sm:$0xff]
        %v1135 = vld [vmem:[#allocation2 + $0x50] sm:$0xff]
        %v1136 = vld [vmem:[#allocation2 + $0x58] sm:$0xff]
        %v1137 = vld [vmem:[#allocation2 + $0x60] sm:$0xff]
        %v1138 = vld [vmem:[#allocation2 + $0x68] sm:$0xff]
        %v1139 = vld [vmem:[#allocation2 + $0x70] sm:$0xff]
        %1140 = vrot.lane.b32.xlu0 %v944, 64
        %v1141 = vpop.permute.xlu0 %1140
        %1142 = vrot.lane.b32.xlu0 %v949, 64
        %v1143 = vpop.permute.xlu0 %1142
        %1144 = vrot.lane.b32.xlu0 %v952, 64
        %v1145 = vpop.permute.xlu0 %1144
        %1146 = vrot.lane.b32.xlu0 %v957, 64
        %v1147 = vpop.permute.xlu0 %1146
        %1148 = vrot.lane.b32.xlu0 %v960, 64
        %v1149 = vpop.permute.xlu0 %1148
        %1150 = vrot.lane.b32.xlu0 %v965, 64
        %v1151 = vpop.permute.xlu0 %1150
        %1152 = vrot.lane.b32.xlu0 %v968, 64
        %v1153 = vpop.permute.xlu0 %1152
        %1154 = vrot.lane.b32.xlu0 %v976, 64
        %v1155 = vpop.permute.xlu0 %1154
        %1156 = vrot.lane.b32.xlu0 %v981, 64
        %v1157 = vpop.permute.xlu0 %1156
        %1158 = vrot.lane.b32.xlu0 %v984, 64
        %v1159 = vpop.permute.xlu0 %1158
        %1160 = vrot.lane.b32.xlu0 %v989, 64
        %v1161 = vpop.permute.xlu0 %1160
        %1162 = vrot.lane.b32.xlu0 %v992, 64
        %v1163 = vpop.permute.xlu0 %1162
        %1164 = vrot.lane.b32.xlu0 %v997, 64
        %v1165 = vpop.permute.xlu0 %1164
        %1166 = vrot.lane.b32.xlu0 %v1000, 64
        %v1167 = vpop.permute.xlu0 %1166
        %v1182 = vadd.f32 %v1126, %v1141
        %v1183 = vadd.f32 %v1127, %v1143
        %v1184 = vadd.f32 %v1128, %v1145
        %v1185 = vadd.f32 %v1129, %v1147
        %v1186 = vadd.f32 %v1130, %v1149
        %v1187 = vadd.f32 %v1131, %v1151
        %v1188 = vadd.f32 %v1132, %v1153
        %v1189 = vadd.f32 %v1133, %v1155
        %v1190 = vadd.f32 %v1134, %v1157
        %v1191 = vadd.f32 %v1135, %v1159
        %v1192 = vadd.f32 %v1136, %v1161
        %v1193 = vadd.f32 %v1137, %v1163
        %v1194 = vadd.f32 %v1138, %v1165
        %v1195 = vadd.f32 %v1139, %v1167
        %1196 = vst.msk [vmem:[#allocation2] sm:$0xff] %vm791, %v1182
        %1197 = vst.msk [vmem:[#allocation2 + $0x8] sm:$0xff] %vm791, %v1183
        %1198 = vst.msk [vmem:[#allocation2 + $0x10] sm:$0xff] %vm791, %v1184
        %1199 = vst.msk [vmem:[#allocation2 + $0x18] sm:$0xff] %vm791, %v1185
        %1200 = vst.msk [vmem:[#allocation2 + $0x20] sm:$0xff] %vm791, %v1186
        %1201 = vst.msk [vmem:[#allocation2 + $0x28] sm:$0xff] %vm791, %v1187
        %1202 = vst.msk [vmem:[#allocation2 + $0x30] sm:$0xff] %vm791, %v1188
        %1203 = vst.msk [vmem:[#allocation2 + $0x40] sm:$0xff] %vm791, %v1189
        %1204 = vst.msk [vmem:[#allocation2 + $0x48] sm:$0xff] %vm791, %v1190
        %1205 = vst.msk [vmem:[#allocation2 + $0x50] sm:$0xff] %vm791, %v1191
        %1206 = vst.msk [vmem:[#allocation2 + $0x58] sm:$0xff] %vm791, %v1192
        %1207 = vst.msk [vmem:[#allocation2 + $0x60] sm:$0xff] %vm791, %v1193
        %1208 = vst.msk [vmem:[#allocation2 + $0x68] sm:$0xff] %vm791, %v1194
        %1209 = vst.msk [vmem:[#allocation2 + $0x70] sm:$0xff] %vm791, %v1195
        %v1210 = vld [vmem:[#allocation2] sm:$0xff]
        %v1211 = vld [vmem:[#allocation2 + $0x8] sm:$0xff]
        %v1212 = vld [vmem:[#allocation2 + $0x10] sm:$0xff]
        %v1213 = vld [vmem:[#allocation2 + $0x18] sm:$0xff]
        %v1214 = vld [vmem:[#allocation2 + $0x20] sm:$0xff]
        %v1215 = vld [vmem:[#allocation2 + $0x28] sm:$0xff]
        %v1216 = vld [vmem:[#allocation2 + $0x30] sm:$0xff]
        %v1217 = vld [vmem:[#allocation2 + $0x38] sm:$0xff]
        %v1218 = vld [vmem:[#allocation2 + $0x40] sm:$0xff]
        %v1219 = vld [vmem:[#allocation2 + $0x48] sm:$0xff]
        %v1220 = vld [vmem:[#allocation2 + $0x50] sm:$0xff]
        %v1221 = vld [vmem:[#allocation2 + $0x58] sm:$0xff]
        %v1222 = vld [vmem:[#allocation2 + $0x60] sm:$0xff]
        %v1223 = vld [vmem:[#allocation2 + $0x68] sm:$0xff]
        %v1224 = vld [vmem:[#allocation2 + $0x70] sm:$0xff]
        %v1225 = vld [vmem:[#allocation2 + $0x78] sm:$0xff]
        %v1226 = vld [vmem:[%s5] sm:$0x1]
        %v1228 = vlaneseq
        %v1229 = vshrl.u32 %v1228, 7
        %v1230 = vsub.s32 0, %v1229
        %v1231 = vrot.slane %v1226, %v1230
        %v1233 = vadd.f32 %v1210, %v1231
        %v1234 = vadd.f32 %v1211, %v1231
        %v1235 = vadd.f32 %v1212, %v1231
        %v1236 = vadd.f32 %v1213, %v1231
        %v1237 = vadd.f32 %v1214, %v1231
        %v1238 = vadd.f32 %v1215, %v1231
        %v1239 = vadd.f32 %v1216, %v1231
        %v1240 = vadd.f32 %v1217, %v1231
        %v1241 = vadd.f32 %v1218, %v1231
        %v1242 = vadd.f32 %v1219, %v1231
        %v1243 = vadd.f32 %v1220, %v1231
        %v1244 = vadd.f32 %v1221, %v1231
        %v1245 = vadd.f32 %v1222, %v1231
        %v1246 = vadd.f32 %v1223, %v1231
        %v1247 = vadd.f32 %v1224, %v1231
        %v1248 = vadd.f32 %v1225, %v1231
        %v1249 = vmax.f32 %v1233, 0.0
        %v1250 = vmax.f32 %v1234, 0.0
        %v1251 = vmax.f32 %v1235, 0.0
        %v1252 = vmax.f32 %v1236, 0.0
        %v1253 = vmax.f32 %v1237, 0.0
        %v1254 = vmax.f32 %v1238, 0.0
        %v1255 = vmax.f32 %v1239, 0.0
        %v1256 = vmax.f32 %v1240, 0.0
        %v1257 = vmax.f32 %v1241, 0.0
        %v1258 = vmax.f32 %v1242, 0.0
        %v1259 = vmax.f32 %v1243, 0.0
        %v1260 = vmax.f32 %v1244, 0.0
        %v1261 = vmax.f32 %v1245, 0.0
        %v1262 = vmax.f32 %v1246, 0.0
        %v1263 = vmax.f32 %v1247, 0.0
        %v1264 = vmax.f32 %v1248, 0.0
        %v1265 = vpack.c.bf16 %v1250, %v1249
        %v1266 = vpack.c.bf16 %v1252, %v1251
        %v1267 = vpack.c.bf16 %v1254, %v1253
        %v1268 = vpack.c.bf16 %v1256, %v1255
        %v1269 = vpack.c.bf16 %v1258, %v1257
        %v1270 = vpack.c.bf16 %v1260, %v1259
        %v1271 = vpack.c.bf16 %v1262, %v1261
        %v1272 = vpack.c.bf16 %v1264, %v1263
        %v1273 = vld [vmem:[%s3] sm:$0xf]
        %v1274 = vld [vmem:[%s3 + $0x4] sm:$0xf]
        %v1275 = vld [vmem:[%s3 + $0x8] sm:$0xf]
        %v1276 = vld [vmem:[%s3 + $0xc] sm:$0xf]
        %v1277 = vld [vmem:[%s267] sm:$0xff]
        %v1278 = vld [vmem:[%s267 + $0x8] sm:$0xff]
        %v1279 = vld [vmem:[%s267 + $0x10] sm:$0xff]
        %v1280 = vld [vmem:[%s267 + $0x18] sm:$0xff]
        %v1281 = vld [vmem:[%s267 + $0x20] sm:$0xff]
        %v1282 = vld [vmem:[%s267 + $0x28] sm:$0xff]
        %v1283 = vld [vmem:[%s267 + $0x30] sm:$0xff]
        %v1284 = vld [vmem:[%s267 + $0x38] sm:$0xff]
        %v1285 = vld [vmem:[%s267 + $0x40] sm:$0xff]
        %v1286 = vld [vmem:[%s267 + $0x48] sm:$0xff]
        %v1287 = vld [vmem:[%s267 + $0x50] sm:$0xff]
        %v1288 = vld [vmem:[%s267 + $0x58] sm:$0xff]
        %v1289 = vld [vmem:[%s267 + $0x60] sm:$0xff]
        %v1290 = vld [vmem:[%s267 + $0x68] sm:$0xff]
        %v1291 = vld [vmem:[%s267 + $0x70] sm:$0xff]
        %v1292 = vld [vmem:[%s267 + $0x78] sm:$0xff]
        %v1293 = vld [vmem:[%s6] sm:$0x1]
        %v1295 = vlaneseq
        %v1296 = vshrl.u32 %v1295, 7
        %v1297 = vsub.s32 0, %v1296
        %v1298 = vrot.slane %v1293, %v1297
        %v1304 = vunpack.c.l.b16 %v1273
        %v1305 = vunpack.c.l.b16 %v1274
        %v1306 = vunpack.c.l.b16 %v1275
        %v1307 = vunpack.c.l.b16 %v1276
        %v1308 = vpack.c.b16 %v1305, %v1304
        %v1309 = vpack.c.b16 %v1307, %v1306
        %v1313 = vsel %vm791, %v1265, 0
        %v1316 = vsel %vm791, %v1266, 0
        %v1319 = vsel %vm791, %v1267, 0
        %v1322 = vsel %vm791, %v1268, 0
        %v1325 = vsel %vm791, %v1269, 0
        %v1328 = vsel %vm791, %v1270, 0
        %v1331 = vsel %vm791, %v1271, 0
        %v1334 = vsel %vm791, %v1272, 0
        %1336 = vmatprep.subr.bf16.mxu0 0
        %1337 = vmatpush1.bf16.msra.mxu0 %v1308
        %1338 = vmatprep.subr.bf16.mxu0 0
        %1339 = vmatpush1.bf16.msra.mxu0 %v1309
        %1340 = vmatprep.subr.bf16.mxu0 0
        %1341 = vmatpush1.bf16.msra.mxu0 0
        %1342 = vmatprep.subr.bf16.mxu0 0
        %1343 = vmatpush1.bf16.msra.mxu0 0
        %1344 = vmatprep.subr.bf16.mxu0 0
        %1345 = vmatpush1.bf16.msra.mxu0 0
        %1346 = vmatprep.subr.bf16.mxu0 0
        %1347 = vmatpush1.bf16.msra.mxu0 0
        %1348 = vmatprep.subr.bf16.mxu0 0
        %1349 = vmatpush1.bf16.msra.mxu0 0
        %1350 = vmatprep.subr.bf16.mxu0 0
        %1351 = vmatpush1.bf16.msra.mxu0 0
        %1352 = vmatprep.subr.bf16.mxu0 0
        %1353 = vmatpush1.bf16.msra.mxu0 0
        %1354 = vmatprep.subr.bf16.mxu0 0
        %1355 = vmatpush1.bf16.msra.mxu0 0
        %1356 = vmatprep.subr.bf16.mxu0 0
        %1357 = vmatpush1.bf16.msra.mxu0 0
        %1358 = vmatprep.subr.bf16.mxu0 0
        %1359 = vmatpush1.bf16.msra.mxu0 0
        %1360 = vmatprep.subr.bf16.mxu0 0
        %1361 = vmatpush1.bf16.msra.mxu0 0
        %1362 = vmatprep.subr.bf16.mxu0 0
        %1363 = vmatpush1.bf16.msra.mxu0 0
        %1364 = vmatprep.subr.bf16.mxu0 0
        %1365 = vmatpush1.bf16.msra.mxu0 0
        %1366 = vmatprep.subr.bf16.mxu0 0
        %1367 = vmatpush1.bf16.msra.mxu0 0
        %1368 = vmatprep.mubr.bf16.mxu0 0
        %1369 = vmatmul.mubr.bf16.gmra.mrb[0].mxu0 %v1313
        %v1370 = vpop.f32.mrb[0].mxu0
        %v1371 = vadd.f32 %v1298, %v1370
        %v1372 = vpop.f32.mrb[0].mxu0
        %v1373 = vpop.f32.mrb[0].mxu0
        %v1374 = vadd.f32 %v1298, %v1373
        %v1375 = vpop.f32.mrb[0].mxu0
        %1376 = vmatprep.mubr.bf16.mxu0 0
        %1377 = vmatmul.mubr.bf16.gmra.mrb[0].mxu0 %v1316
        %v1378 = vpop.f32.mrb[0].mxu0
        %v1379 = vadd.f32 %v1298, %v1378
        %v1380 = vpop.f32.mrb[0].mxu0
        %v1381 = vpop.f32.mrb[0].mxu0
        %v1382 = vadd.f32 %v1298, %v1381
        %v1383 = vpop.f32.mrb[0].mxu0
        %1384 = vmatprep.mubr.bf16.mxu0 0
        %1385 = vmatmul.mubr.bf16.gmra.mrb[0].mxu0 %v1319
        %v1386 = vpop.f32.mrb[0].mxu0
        %v1387 = vadd.f32 %v1298, %v1386
        %v1388 = vpop.f32.mrb[0].mxu0
        %v1389 = vpop.f32.mrb[0].mxu0
        %v1390 = vadd.f32 %v1298, %v1389
        %v1391 = vpop.f32.mrb[0].mxu0
        %1392 = vmatprep.mubr.bf16.mxu0 0
        %1393 = vmatmul.mubr.bf16.gmra.mrb[0].mxu0 %v1322
        %v1394 = vpop.f32.mrb[0].mxu0
        %v1395 = vadd.f32 %v1298, %v1394
        %v1396 = vpop.f32.mrb[0].mxu0
        %v1397 = vpop.f32.mrb[0].mxu0
        %v1398 = vadd.f32 %v1298, %v1397
        %v1399 = vpop.f32.mrb[0].mxu0
        %1400 = vmatprep.mubr.bf16.mxu0 0
        %1401 = vmatmul.mubr.bf16.gmra.mrb[0].mxu0 %v1325
        %v1402 = vpop.f32.mrb[0].mxu0
        %v1403 = vadd.f32 %v1298, %v1402
        %v1404 = vpop.f32.mrb[0].mxu0
        %v1405 = vpop.f32.mrb[0].mxu0
        %v1406 = vadd.f32 %v1298, %v1405
        %v1407 = vpop.f32.mrb[0].mxu0
        %1408 = vmatprep.mubr.bf16.mxu0 0
        %1409 = vmatmul.mubr.bf16.gmra.mrb[0].mxu0 %v1328
        %v1410 = vpop.f32.mrb[0].mxu0
        %v1411 = vadd.f32 %v1298, %v1410
        %v1412 = vpop.f32.mrb[0].mxu0
        %v1413 = vpop.f32.mrb[0].mxu0
        %v1414 = vadd.f32 %v1298, %v1413
        %v1415 = vpop.f32.mrb[0].mxu0
        %1416 = vmatprep.mubr.bf16.mxu0 0
        %1417 = vmatmul.mubr.bf16.gmra.mrb[0].mxu0 %v1331
        %v1418 = vpop.f32.mrb[0].mxu0
        %v1419 = vadd.f32 %v1298, %v1418
        %v1420 = vpop.f32.mrb[0].mxu0
        %v1421 = vpop.f32.mrb[0].mxu0
        %v1422 = vadd.f32 %v1298, %v1421
        %v1423 = vpop.f32.mrb[0].mxu0
        %1424 = vmatprep.mubr.bf16.mxu0 0
        %1425 = vmatmul.mubr.bf16.gmra.mrb[0].mxu0 %v1334
        %v1426 = vpop.f32.mrb[0].mxu0
        %v1427 = vadd.f32 %v1298, %v1426
        %v1428 = vpop.f32.mrb[0].mxu0
        %v1429 = vpop.f32.mrb[0].mxu0
        %v1430 = vadd.f32 %v1298, %v1429
        %v1431 = vpop.f32.mrb[0].mxu0
        %1432 = vdwg.mxu0
        %v1433 = vadd.f32 %v1371, %v1277
        %v1434 = vadd.f32 %v1374, %v1278
        %v1435 = vadd.f32 %v1379, %v1279
        %v1436 = vadd.f32 %v1382, %v1280
        %v1437 = vadd.f32 %v1387, %v1281
        %v1438 = vadd.f32 %v1390, %v1282
        %v1439 = vadd.f32 %v1395, %v1283
        %v1440 = vadd.f32 %v1398, %v1284
        %v1441 = vadd.f32 %v1403, %v1285
        %v1442 = vadd.f32 %v1406, %v1286
        %v1443 = vadd.f32 %v1411, %v1287
        %v1444 = vadd.f32 %v1414, %v1288
        %v1445 = vadd.f32 %v1419, %v1289
        %v1446 = vadd.f32 %v1422, %v1290
        %v1447 = vadd.f32 %v1427, %v1291
        %v1448 = vadd.f32 %v1430, %v1292
        %v1449 = vmax.f32 %v1433, 0.0
        %v1450 = vmax.f32 %v1434, 0.0
        %v1451 = vmax.f32 %v1435, 0.0
        %v1452 = vmax.f32 %v1436, 0.0
        %v1453 = vmax.f32 %v1437, 0.0
        %v1454 = vmax.f32 %v1438, 0.0
        %v1455 = vmax.f32 %v1439, 0.0
        %v1456 = vmax.f32 %v1440, 0.0
        %v1457 = vmax.f32 %v1441, 0.0
        %v1458 = vmax.f32 %v1442, 0.0
        %v1459 = vmax.f32 %v1443, 0.0
        %v1460 = vmax.f32 %v1444, 0.0
        %v1461 = vmax.f32 %v1445, 0.0
        %v1462 = vmax.f32 %v1446, 0.0
        %v1463 = vmax.f32 %v1447, 0.0
        %v1464 = vmax.f32 %v1448, 0.0
        %1465 = vst [vmem:[%s297] sm:$0xff] %v1449
        %1466 = vst [vmem:[%s297 + $0x8] sm:$0xff] %v1450
        %1467 = vst [vmem:[%s297 + $0x10] sm:$0xff] %v1451
        %1468 = vst [vmem:[%s297 + $0x18] sm:$0xff] %v1452
        %1469 = vst [vmem:[%s297 + $0x20] sm:$0xff] %v1453
        %1470 = vst [vmem:[%s297 + $0x28] sm:$0xff] %v1454
        %1471 = vst [vmem:[%s297 + $0x30] sm:$0xff] %v1455
        %1472 = vst [vmem:[%s297 + $0x38] sm:$0xff] %v1456
        %1473 = vst [vmem:[%s297 + $0x40] sm:$0xff] %v1457
        %1474 = vst [vmem:[%s297 + $0x48] sm:$0xff] %v1458
        %1475 = vst [vmem:[%s297 + $0x50] sm:$0xff] %v1459
        %1476 = vst [vmem:[%s297 + $0x58] sm:$0xff] %v1460
        %1477 = vst [vmem:[%s297 + $0x60] sm:$0xff] %v1461
        %1478 = vst [vmem:[%s297 + $0x68] sm:$0xff] %v1462
        %1479 = vst [vmem:[%s297 + $0x70] sm:$0xff] %v1463
        %1480 = vst [vmem:[%s297 + $0x78] sm:$0xff] %v1464
        %s1481 = sand.u32 %s184, 1
        %s1482 = scalar_lea.sflag [#allocation5], %s1481
        %s1483 = sand.u32 %s184, 1
        %s1484 = smul.addr %s1483, 128
        %s1485 = scalar_lea.vmem [#allocation6], %s1484
        // Predicated region
        $region53: #{tpu_custom_call.1} parent=47 // pred_check
          %p1486 = pneg %p194
        $region54: #{tpu_custom_call.1} parent=47 // pred_check_branch
          %1488 = sbr.rel (%p1486) target = $region56
        $region55: #{tpu_custom_call.1} parent=47 // pred_region
          %s1489 = smul.u32 2, %s24
          %s1491 = ssub.s32 2048, 2048
          %1492 = vsyncadd %s1482, %s1491
          %s1493 = smul.addr %s1489, 8
          %s1494 = smul.addr %s1493, 128
          %s1495 = scalar_lea.hbm %s7, %s1494
          %s1496 = sshll.u32 %s1485, 4
          %s1497 = int_to_ptr.vmem [resolvable:$true] %s1496
          %1502 = dma.vmem_to_hbm [thread:$0]  %s1497, 2048, %s1495, %s1482, 128, 128, 8
        $region56: #{tpu_custom_call.1} parent=47 // pred_fallthru
          _
      $region48: #{tpu_custom_call.1} parent=5 // pred_fallthru
        _
      %p1503 = scmp.le.s32.totalorder 2, %s19
      // Predicated region
      $region57: #{tpu_custom_call.1} parent=5 // pred_check
        %p1504 = pneg %p1503
      $region58: #{tpu_custom_call.1} parent=5 // pred_check_branch
        %1506 = sbr.rel (%p1504) target = $region60
      $region59: #{tpu_custom_call.1} parent=5 // pred_region
        %s1507 = ssub.s32 %s19, 2
        // Predicated region
        $region61: #{tpu_custom_call.1} parent=59 // pred_check
          %p1508 = pneg %p200
        $region62: #{tpu_custom_call.1} parent=59 // pred_check_branch
          %1510 = sbr.rel (%p1508) target = $region64
        $region63: #{tpu_custom_call.1} parent=59 // pred_region
          %s1511 = sand.u32 %s185, 1
          %s1512 = scalar_lea.sflag [#allocation5], %s1511
          %s1513 = sand.u32 %s185, 1
          %s1514 = smul.addr %s1513, 128
          %s1515 = scalar_lea.vmem [#allocation6], %s1514
          %1516 = dma.done %s1512, 2048
        $region64: #{tpu_custom_call.1} parent=59 // pred_fallthru
          _
      $region60: #{tpu_custom_call.1} parent=5 // pred_fallthru
        _
    $region6: #{tpu_custom_call.1} parent=1 // loop_footer
      %s23 = sadd.s32 1, %s19
    $region7: #{tpu_custom_call.1} parent=1 // loop_footer_branch
      %18 = sbr.rel target = $region3
    $region8: #{tpu_custom_call.1} parent=1 // loop_exit
      _
    %1517 = vsyncpa [#allocation4], 1
    %s1518 = scalar_lea.sflag [#allocation4], 1
    %1519 = vsyncpa %s1518, 1
    %1520 = vsyncpa [#allocation5], 1
    %s1521 = scalar_lea.sflag [#allocation5], 1
    %1522 = vsyncpa %s1521, 1

</llo_original>
